<compile_context>
chip_gen: v7x
topology: tpu7x:2x2x1
jax: 0.10.0
libtpu: 0.0.40
codegen_flags: <defaults>
</compile_context>

<pallas_src>
import math

import jax
import jax.numpy as jnp
from jax.experimental import pallas as pl
from jax.experimental.pallas import tpu as pltpu


def _mapping_kernel(x_ref, b_ref, w_hbm, o_ref, wbuf, sem):
    # x_ref : (B, D)    input latents            (VMEM)
    # b_ref : (L, D)    stacked biases           (VMEM, one (8,128)x2 tile)
    # w_hbm : (L, D, D) stacked prepped weights  (HBM, streamed manually)
    # o_ref : (B, D)    output latents           (VMEM)
    # wbuf  : (2, D, D) double-buffer scratch    (VMEM)
    # sem   : (2,)      DMA semaphores
    L = b_ref.shape[0]

    # Prefetch layer 0's weights before doing any compute.
    pltpu.make_async_copy(w_hbm.at[0], wbuf.at[0], sem.at[0]).start()

    x = x_ref[...].astype(jnp.float32)

    # PixelNorm: x / sqrt(mean(x^2, axis=-1) + 1e-8)  (overlaps with layer-0 DMA)
    ms = jnp.mean(x * x, axis=-1, keepdims=True)
    h = x * jax.lax.rsqrt(ms + 1e-8)

    # 8 fused (EqualLRLinear -> LeakyReLU(0.2)) layers, statically unrolled,
    # with per-layer weight streaming (classic double buffer).
    for i in range(L):
        slot = i & 1
        if i + 1 < L:
            pltpu.make_async_copy(
                w_hbm.at[i + 1], wbuf.at[1 - slot], sem.at[1 - slot]).start()
        pltpu.make_async_copy(w_hbm.at[i], wbuf.at[slot], sem.at[slot]).wait()

        w = wbuf[slot]                                  # (D, D), (in, out) layout
        b = b_ref[pl.ds(i, 1), :]                       # (1, D) row, broadcasts
        y = jnp.dot(h, w.astype(jnp.float32),
                    preferred_element_type=jnp.float32) + b
        h = jnp.maximum(y, 0.2 * y)                     # LeakyReLU(0.2)

    o_ref[...] = h.astype(o_ref.dtype)


def prepare_mapping_params(weights_orig, biases, weight_dtype=jnp.float32):
    """One-time parameter prep (do this at init, NOT per forward call).

    weights_orig: (L, out, in) PyTorch-layout per-layer weights (weight_orig)
    biases:       (L, out)
    Returns (w_prepped, b_prepped) where w_prepped is (L, in, out) with the
    EqualLR scale sqrt(2/fan_in) already folded in.
    """
    L, out_dim, in_dim = weights_orig.shape
    scale = math.sqrt(2.0 / in_dim)                     # EqualLR: fan_in = in_dim
    w_io = jnp.transpose(weights_orig, (0, 2, 1)) * scale
    return w_io.astype(weight_dtype), biases.astype(jnp.float32)


def mapping_network(x, w_prepped, b_prepped):
    """StyleGAN2 MappingNetwork forward.

    x:         (B, 256) float32 latents
    w_prepped: (L, 256, 256) pre-transposed (in, out), EqualLR-scaled weights
    b_prepped: (L, 256) biases
    """
    B, D = x.shape
    L = w_prepped.shape[0]
    wbytes = jnp.dtype(w_prepped.dtype).itemsize

    cost = pl.CostEstimate(
        flops=2 * L * B * D * D,
        bytes_accessed=L * D * D * wbytes + (2 * B + L) * D * 4,
        transcendentals=B,
    )

    return pl.pallas_call(
        _mapping_kernel,
        out_shape=jax.ShapeDtypeStruct((B, D), x.dtype),
        in_specs=[
            pl.BlockSpec(memory_space=pltpu.MemorySpace.VMEM),   # x
            pl.BlockSpec(memory_space=pltpu.MemorySpace.VMEM),   # biases
            pl.BlockSpec(memory_space=pl.ANY),                   # weights (HBM)
        ],
        out_specs=pl.BlockSpec(memory_space=pltpu.MemorySpace.VMEM),
        scratch_shapes=[
            pltpu.VMEM((2, D, D), w_prepped.dtype),              # weight double buffer
            pltpu.SemaphoreType.DMA((2,)),
        ],
        cost_estimate=cost,
    )(x, b_prepped, w_prepped)


if __name__ == "__main__":
    # Module config: MappingNetwork() = PixelNorm + 8 x (EqualLRLinear(256,256), LeakyReLU(0.2))
    B, D, L = 8, 256, 8

    key = jax.random.PRNGKey(0)
    kx, kw = jax.random.split(key)
    x = jax.random.normal(kx, (B, D), dtype=jnp.float32)
    # linear.weight.data.normal_() -> standard normal; linear.bias.data.zero_()
    weights_orig = jax.random.normal(kw, (L, D, D), dtype=jnp.float32)
    biases = jnp.zeros((L, D), dtype=jnp.float32)

    # One-time parameter prep (hoisted out of the hot path).
    w_prepped, b_prepped = prepare_mapping_params(weights_orig, biases)
    w_prepped = jax.block_until_ready(w_prepped)

    out = mapping_network(x, w_prepped, b_prepped)
    out = jax.block_until_ready(out)

    # Pure-JAX reference mirroring the PyTorch module.
    scale = math.sqrt(2.0 / D)
    h = x / jnp.sqrt(jnp.mean(x * x, axis=1, keepdims=True) + 1e-8)
    for i in range(L):
        w = weights_orig[i] * scale                    # (out, in)
        h = jnp.dot(h, w.T, precision=jax.lax.Precision.HIGHEST) + biases[i]
        h = jnp.where(h >= 0, h, 0.2 * h)
    ref = h

    assert out.shape == (B, D)
    assert jnp.allclose(out, ref, atol=1e-3, rtol=1e-3), float(
        jnp.max(jnp.abs(out - ref)))
    print("KERNEL_OK")
</pallas_src>

<mosaic_0001>
module attributes {stable_mosaic.version = 11 : i64} {
  func.func @_mapping_kernel(%arg0: memref<8x256xf32, #tpu.memory_space<vmem>>, %arg1: memref<8x256xf32, #tpu.memory_space<vmem>>, %arg2: memref<8x256x256xf32, #tpu.memory_space<any>>, %arg3: memref<8x256xf32, #tpu.memory_space<vmem>>, %arg4: memref<2x256x256xf32, #tpu.memory_space<vmem>>, %arg5: memref<2x!tpu.dma_semaphore, #tpu.memory_space<semaphore_mem>>) attributes {dimension_semantics = [], scalar_prefetch = 0 : i64, scratch_operands = 2 : i64, tpu.core_type = #tpu.core_type<tc>} {
    %c0_i32 = arith.constant 0 : i32
    %c0_i32_0 = arith.constant 0 : i32
    %c0_i32_1 = arith.constant 0 : i32
    %c0_i32_2 = arith.constant 0 : i32
    %c0_i32_3 = arith.constant 0 : i32
    %0 = tpu.memref_slice %arg2[%c0_i32, %c0_i32_2, %c0_i32_3] : memref<8x256x256xf32, #tpu.memory_space<any>> -> memref<1x256x256xf32, #tpu.memory_space<any>>
    %1 = tpu.memref_squeeze %0 : memref<1x256x256xf32, #tpu.memory_space<any>> -> memref<256x256xf32, #tpu.memory_space<any>>
    %c0_i32_4 = arith.constant 0 : i32
    %c0_i32_5 = arith.constant 0 : i32
    %2 = tpu.memref_slice %arg4[%c0_i32_0, %c0_i32_4, %c0_i32_5] : memref<2x256x256xf32, #tpu.memory_space<vmem>> -> memref<1x256x256xf32, #tpu.memory_space<vmem>>
    %3 = tpu.memref_squeeze %2 : memref<1x256x256xf32, #tpu.memory_space<vmem>> -> memref<256x256xf32, #tpu.memory_space<vmem>>
    %4 = tpu.memref_slice %arg5[%c0_i32_1] : memref<2x!tpu.dma_semaphore, #tpu.memory_space<semaphore_mem>> -> memref<1x!tpu.dma_semaphore, #tpu.memory_space<semaphore_mem>>
    %5 = tpu.memref_squeeze %4 : memref<1x!tpu.dma_semaphore, #tpu.memory_space<semaphore_mem>> -> memref<!tpu.dma_semaphore, #tpu.memory_space<semaphore_mem>>
    tpu.enqueue_dma source(%1 : memref<256x256xf32, #tpu.memory_space<any>>) target(%3 : memref<256x256xf32, #tpu.memory_space<vmem>>) target_semaphore(%5 : memref<!tpu.dma_semaphore, #tpu.memory_space<semaphore_mem>>)
    %c0 = arith.constant 0 : index
    %c0_6 = arith.constant 0 : index
    %6 = vector.load %arg0[%c0, %c0_6] : memref<8x256xf32, #tpu.memory_space<vmem>>, vector<8x256xf32>
    %7 = arith.mulf %6, %6 : vector<8x256xf32>
    %cst = arith.constant dense<0.000000e+00> : vector<8xf32>
    %8 = vector.multi_reduction <add>, %7, %cst [1] : vector<8x256xf32> to vector<8xf32>
    %9 = vector.shape_cast %8 : vector<8xf32> to vector<8x1xf32>
    %cst_7 = arith.constant 2.560000e+02 : f32
    %10 = vector.broadcast %cst_7 : f32 to vector<8x1xf32>
    %11 = arith.divf %9, %10 : vector<8x1xf32>
    %cst_8 = arith.constant 9.99999993E-9 : f32
    %12 = vector.broadcast %cst_8 : f32 to vector<8x1xf32>
    %13 = arith.addf %11, %12 : vector<8x1xf32>
    %14 = math.rsqrt %13 : vector<8x1xf32>
    %15 = vector.broadcast %14 : vector<8x1xf32> to vector<8x256xf32>
    %16 = arith.mulf %6, %15 : vector<8x256xf32>
    %c1_i32 = arith.constant 1 : i32
    %c1_i32_9 = arith.constant 1 : i32
    %c1_i32_10 = arith.constant 1 : i32
    %c0_i32_11 = arith.constant 0 : i32
    %c0_i32_12 = arith.constant 0 : i32
    %17 = tpu.memref_slice %arg2[%c1_i32, %c0_i32_11, %c0_i32_12] : memref<8x256x256xf32, #tpu.memory_space<any>> -> memref<1x256x256xf32, #tpu.memory_space<any>>
    %18 = tpu.memref_squeeze %17 : memref<1x256x256xf32, #tpu.memory_space<any>> -> memref<256x256xf32, #tpu.memory_space<any>>
    %c0_i32_13 = arith.constant 0 : i32
    %c0_i32_14 = arith.constant 0 : i32
    %19 = tpu.memref_slice %arg4[%c1_i32_9, %c0_i32_13, %c0_i32_14] : memref<2x256x256xf32, #tpu.memory_space<vmem>> -> memref<1x256x256xf32, #tpu.memory_space<vmem>>
    %20 = tpu.memref_squeeze %19 : memref<1x256x256xf32, #tpu.memory_space<vmem>> -> memref<256x256xf32, #tpu.memory_space<vmem>>
    %21 = tpu.memref_slice %arg5[%c1_i32_10] : memref<2x!tpu.dma_semaphore, #tpu.memory_space<semaphore_mem>> -> memref<1x!tpu.dma_semaphore, #tpu.memory_space<semaphore_mem>>
    %22 = tpu.memref_squeeze %21 : memref<1x!tpu.dma_semaphore, #tpu.memory_space<semaphore_mem>> -> memref<!tpu.dma_semaphore, #tpu.memory_space<semaphore_mem>>
    tpu.enqueue_dma source(%18 : memref<256x256xf32, #tpu.memory_space<any>>) target(%20 : memref<256x256xf32, #tpu.memory_space<vmem>>) target_semaphore(%22 : memref<!tpu.dma_semaphore, #tpu.memory_space<semaphore_mem>>)
    %c0_i32_15 = arith.constant 0 : i32
    %c0_i32_16 = arith.constant 0 : i32
    %c0_i32_17 = arith.constant 0 : i32
    %c0_i32_18 = arith.constant 0 : i32
    %c0_i32_19 = arith.constant 0 : i32
    %23 = tpu.memref_slice %arg2[%c0_i32_15, %c0_i32_18, %c0_i32_19] : memref<8x256x256xf32, #tpu.memory_space<any>> -> memref<1x256x256xf32, #tpu.memory_space<any>>
    %24 = tpu.memref_squeeze %23 : memref<1x256x256xf32, #tpu.memory_space<any>> -> memref<256x256xf32, #tpu.memory_space<any>>
    %c0_i32_20 = arith.constant 0 : i32
    %c0_i32_21 = arith.constant 0 : i32
    %25 = tpu.memref_slice %arg4[%c0_i32_16, %c0_i32_20, %c0_i32_21] : memref<2x256x256xf32, #tpu.memory_space<vmem>> -> memref<1x256x256xf32, #tpu.memory_space<vmem>>
    %26 = tpu.memref_squeeze %25 : memref<1x256x256xf32, #tpu.memory_space<vmem>> -> memref<256x256xf32, #tpu.memory_space<vmem>>
    %27 = tpu.memref_slice %arg5[%c0_i32_17] : memref<2x!tpu.dma_semaphore, #tpu.memory_space<semaphore_mem>> -> memref<1x!tpu.dma_semaphore, #tpu.memory_space<semaphore_mem>>
    %28 = tpu.memref_squeeze %27 : memref<1x!tpu.dma_semaphore, #tpu.memory_space<semaphore_mem>> -> memref<!tpu.dma_semaphore, #tpu.memory_space<semaphore_mem>>
    tpu.wait_dma2 semaphore(%28 : memref<!tpu.dma_semaphore, #tpu.memory_space<semaphore_mem>>) src(%24 : memref<256x256xf32, #tpu.memory_space<any>>) dst(%26 : memref<256x256xf32, #tpu.memory_space<vmem>>)
    %c0_22 = arith.constant 0 : index
    %c0_23 = arith.constant 0 : index
    %c0_24 = arith.constant 0 : index
    %29 = vector.load %arg4[%c0_22, %c0_23, %c0_24] : memref<2x256x256xf32, #tpu.memory_space<vmem>>, vector<1x256x256xf32>
    %30 = vector.shape_cast %29 : vector<1x256x256xf32> to vector<256x256xf32>
    %c0_25 = arith.constant 0 : index
    %c0_26 = arith.constant 0 : index
    %31 = vector.load %arg1[%c0_25, %c0_26] : memref<8x256xf32, #tpu.memory_space<vmem>>, vector<1x256xf32>
    %cst_27 = arith.constant dense<0.000000e+00> : vector<8x256xf32>
    %32 = tpu.matmul %16, %30, %cst_27 {dimension_numbers = #tpu.dot_dimension_numbers<[1], [0], [0], [1], [0, 0, 1, 1], [], []>} : vector<8x256xf32>, vector<256x256xf32>, vector<8x256xf32> -> vector<8x256xf32>
    %33 = vector.broadcast %31 : vector<1x256xf32> to vector<8x256xf32>
    %34 = arith.addf %32, %33 : vector<8x256xf32>
    %cst_28 = arith.constant 2.000000e-01 : f32
    %35 = vector.broadcast %cst_28 : f32 to vector<8x256xf32>
    %36 = arith.mulf %35, %34 : vector<8x256xf32>
    %37 = arith.maximumf %34, %36 : vector<8x256xf32>
    %c2_i32 = arith.constant 2 : i32
    %c0_i32_29 = arith.constant 0 : i32
    %c0_i32_30 = arith.constant 0 : i32
    %c0_i32_31 = arith.constant 0 : i32
    %c0_i32_32 = arith.constant 0 : i32
    %38 = tpu.memref_slice %arg2[%c2_i32, %c0_i32_31, %c0_i32_32] : memref<8x256x256xf32, #tpu.memory_space<any>> -> memref<1x256x256xf32, #tpu.memory_space<any>>
    %39 = tpu.memref_squeeze %38 : memref<1x256x256xf32, #tpu.memory_space<any>> -> memref<256x256xf32, #tpu.memory_space<any>>
    %c0_i32_33 = arith.constant 0 : i32
    %c0_i32_34 = arith.constant 0 : i32
    %40 = tpu.memref_slice %arg4[%c0_i32_29, %c0_i32_33, %c0_i32_34] : memref<2x256x256xf32, #tpu.memory_space<vmem>> -> memref<1x256x256xf32, #tpu.memory_space<vmem>>
    %41 = tpu.memref_squeeze %40 : memref<1x256x256xf32, #tpu.memory_space<vmem>> -> memref<256x256xf32, #tpu.memory_space<vmem>>
    %42 = tpu.memref_slice %arg5[%c0_i32_30] : memref<2x!tpu.dma_semaphore, #tpu.memory_space<semaphore_mem>> -> memref<1x!tpu.dma_semaphore, #tpu.memory_space<semaphore_mem>>
    %43 = tpu.memref_squeeze %42 : memref<1x!tpu.dma_semaphore, #tpu.memory_space<semaphore_mem>> -> memref<!tpu.dma_semaphore, #tpu.memory_space<semaphore_mem>>
    tpu.enqueue_dma source(%39 : memref<256x256xf32, #tpu.memory_space<any>>) target(%41 : memref<256x256xf32, #tpu.memory_space<vmem>>) target_semaphore(%43 : memref<!tpu.dma_semaphore, #tpu.memory_space<semaphore_mem>>)
    %c1_i32_35 = arith.constant 1 : i32
    %c1_i32_36 = arith.constant 1 : i32
    %c1_i32_37 = arith.constant 1 : i32
    %c0_i32_38 = arith.constant 0 : i32
    %c0_i32_39 = arith.constant 0 : i32
    %44 = tpu.memref_slice %arg2[%c1_i32_35, %c0_i32_38, %c0_i32_39] : memref<8x256x256xf32, #tpu.memory_space<any>> -> memref<1x256x256xf32, #tpu.memory_space<any>>
    %45 = tpu.memref_squeeze %44 : memref<1x256x256xf32, #tpu.memory_space<any>> -> memref<256x256xf32, #tpu.memory_space<any>>
    %c0_i32_40 = arith.constant 0 : i32
    %c0_i32_41 = arith.constant 0 : i32
    %46 = tpu.memref_slice %arg4[%c1_i32_36, %c0_i32_40, %c0_i32_41] : memref<2x256x256xf32, #tpu.memory_space<vmem>> -> memref<1x256x256xf32, #tpu.memory_space<vmem>>
    %47 = tpu.memref_squeeze %46 : memref<1x256x256xf32, #tpu.memory_space<vmem>> -> memref<256x256xf32, #tpu.memory_space<vmem>>
    %48 = tpu.memref_slice %arg5[%c1_i32_37] : memref<2x!tpu.dma_semaphore, #tpu.memory_space<semaphore_mem>> -> memref<1x!tpu.dma_semaphore, #tpu.memory_space<semaphore_mem>>
    %49 = tpu.memref_squeeze %48 : memref<1x!tpu.dma_semaphore, #tpu.memory_space<semaphore_mem>> -> memref<!tpu.dma_semaphore, #tpu.memory_space<semaphore_mem>>
    tpu.wait_dma2 semaphore(%49 : memref<!tpu.dma_semaphore, #tpu.memory_space<semaphore_mem>>) src(%45 : memref<256x256xf32, #tpu.memory_space<any>>) dst(%47 : memref<256x256xf32, #tpu.memory_space<vmem>>)
    %c1 = arith.constant 1 : index
    %c0_42 = arith.constant 0 : index
    %c0_43 = arith.constant 0 : index
    %50 = vector.load %arg4[%c1, %c0_42, %c0_43] : memref<2x256x256xf32, #tpu.memory_space<vmem>>, vector<1x256x256xf32>
    %51 = vector.shape_cast %50 : vector<1x256x256xf32> to vector<256x256xf32>
    %c1_44 = arith.constant 1 : index
    %c0_45 = arith.constant 0 : index
    %52 = vector.load %arg1[%c1_44, %c0_45] : memref<8x256xf32, #tpu.memory_space<vmem>>, vector<1x256xf32>
    %cst_46 = arith.constant dense<0.000000e+00> : vector<8x256xf32>
    %53 = tpu.matmul %37, %51, %cst_46 {dimension_numbers = #tpu.dot_dimension_numbers<[1], [0], [0], [1], [0, 0, 1, 1], [], []>} : vector<8x256xf32>, vector<256x256xf32>, vector<8x256xf32> -> vector<8x256xf32>
    %54 = vector.broadcast %52 : vector<1x256xf32> to vector<8x256xf32>
    %55 = arith.addf %53, %54 : vector<8x256xf32>
    %cst_47 = arith.constant 2.000000e-01 : f32
    %56 = vector.broadcast %cst_47 : f32 to vector<8x256xf32>
    %57 = arith.mulf %56, %55 : vector<8x256xf32>
    %58 = arith.maximumf %55, %57 : vector<8x256xf32>
    %c3_i32 = arith.constant 3 : i32
    %c1_i32_48 = arith.constant 1 : i32
    %c1_i32_49 = arith.constant 1 : i32
    %c0_i32_50 = arith.constant 0 : i32
    %c0_i32_51 = arith.constant 0 : i32
    %59 = tpu.memref_slice %arg2[%c3_i32, %c0_i32_50, %c0_i32_51] : memref<8x256x256xf32, #tpu.memory_space<any>> -> memref<1x256x256xf32, #tpu.memory_space<any>>
    %60 = tpu.memref_squeeze %59 : memref<1x256x256xf32, #tpu.memory_space<any>> -> memref<256x256xf32, #tpu.memory_space<any>>
    %c0_i32_52 = arith.constant 0 : i32
    %c0_i32_53 = arith.constant 0 : i32
    %61 = tpu.memref_slice %arg4[%c1_i32_48, %c0_i32_52, %c0_i32_53] : memref<2x256x256xf32, #tpu.memory_space<vmem>> -> memref<1x256x256xf32, #tpu.memory_space<vmem>>
    %62 = tpu.memref_squeeze %61 : memref<1x256x256xf32, #tpu.memory_space<vmem>> -> memref<256x256xf32, #tpu.memory_space<vmem>>
    %63 = tpu.memref_slice %arg5[%c1_i32_49] : memref<2x!tpu.dma_semaphore, #tpu.memory_space<semaphore_mem>> -> memref<1x!tpu.dma_semaphore, #tpu.memory_space<semaphore_mem>>
    %64 = tpu.memref_squeeze %63 : memref<1x!tpu.dma_semaphore, #tpu.memory_space<semaphore_mem>> -> memref<!tpu.dma_semaphore, #tpu.memory_space<semaphore_mem>>
    tpu.enqueue_dma source(%60 : memref<256x256xf32, #tpu.memory_space<any>>) target(%62 : memref<256x256xf32, #tpu.memory_space<vmem>>) target_semaphore(%64 : memref<!tpu.dma_semaphore, #tpu.memory_space<semaphore_mem>>)
    %c2_i32_54 = arith.constant 2 : i32
    %c0_i32_55 = arith.constant 0 : i32
    %c0_i32_56 = arith.constant 0 : i32
    %c0_i32_57 = arith.constant 0 : i32
    %c0_i32_58 = arith.constant 0 : i32
    %65 = tpu.memref_slice %arg2[%c2_i32_54, %c0_i32_57, %c0_i32_58] : memref<8x256x256xf32, #tpu.memory_space<any>> -> memref<1x256x256xf32, #tpu.memory_space<any>>
    %66 = tpu.memref_squeeze %65 : memref<1x256x256xf32, #tpu.memory_space<any>> -> memref<256x256xf32, #tpu.memory_space<any>>
    %c0_i32_59 = arith.constant 0 : i32
    %c0_i32_60 = arith.constant 0 : i32
    %67 = tpu.memref_slice %arg4[%c0_i32_55, %c0_i32_59, %c0_i32_60] : memref<2x256x256xf32, #tpu.memory_space<vmem>> -> memref<1x256x256xf32, #tpu.memory_space<vmem>>
    %68 = tpu.memref_squeeze %67 : memref<1x256x256xf32, #tpu.memory_space<vmem>> -> memref<256x256xf32, #tpu.memory_space<vmem>>
    %69 = tpu.memref_slice %arg5[%c0_i32_56] : memref<2x!tpu.dma_semaphore, #tpu.memory_space<semaphore_mem>> -> memref<1x!tpu.dma_semaphore, #tpu.memory_space<semaphore_mem>>
    %70 = tpu.memref_squeeze %69 : memref<1x!tpu.dma_semaphore, #tpu.memory_space<semaphore_mem>> -> memref<!tpu.dma_semaphore, #tpu.memory_space<semaphore_mem>>
    tpu.wait_dma2 semaphore(%70 : memref<!tpu.dma_semaphore, #tpu.memory_space<semaphore_mem>>) src(%66 : memref<256x256xf32, #tpu.memory_space<any>>) dst(%68 : memref<256x256xf32, #tpu.memory_space<vmem>>)
    %c0_61 = arith.constant 0 : index
    %c0_62 = arith.constant 0 : index
    %c0_63 = arith.constant 0 : index
    %71 = vector.load %arg4[%c0_61, %c0_62, %c0_63] : memref<2x256x256xf32, #tpu.memory_space<vmem>>, vector<1x256x256xf32>
    %72 = vector.shape_cast %71 : vector<1x256x256xf32> to vector<256x256xf32>
    %c2 = arith.constant 2 : index
    %c0_64 = arith.constant 0 : index
    %73 = vector.load %arg1[%c2, %c0_64] : memref<8x256xf32, #tpu.memory_space<vmem>>, vector<1x256xf32>
    %cst_65 = arith.constant dense<0.000000e+00> : vector<8x256xf32>
    %74 = tpu.matmul %58, %72, %cst_65 {dimension_numbers = #tpu.dot_dimension_numbers<[1], [0], [0], [1], [0, 0, 1, 1], [], []>} : vector<8x256xf32>, vector<256x256xf32>, vector<8x256xf32> -> vector<8x256xf32>
    %75 = vector.broadcast %73 : vector<1x256xf32> to vector<8x256xf32>
    %76 = arith.addf %74, %75 : vector<8x256xf32>
    %cst_66 = arith.constant 2.000000e-01 : f32
    %77 = vector.broadcast %cst_66 : f32 to vector<8x256xf32>
    %78 = arith.mulf %77, %76 : vector<8x256xf32>
    %79 = arith.maximumf %76, %78 : vector<8x256xf32>
    %c4_i32 = arith.constant 4 : i32
    %c0_i32_67 = arith.constant 0 : i32
    %c0_i32_68 = arith.constant 0 : i32
    %c0_i32_69 = arith.constant 0 : i32
    %c0_i32_70 = arith.constant 0 : i32
    %80 = tpu.memref_slice %arg2[%c4_i32, %c0_i32_69, %c0_i32_70] : memref<8x256x256xf32, #tpu.memory_space<any>> -> memref<1x256x256xf32, #tpu.memory_space<any>>
    %81 = tpu.memref_squeeze %80 : memref<1x256x256xf32, #tpu.memory_space<any>> -> memref<256x256xf32, #tpu.memory_space<any>>
    %c0_i32_71 = arith.constant 0 : i32
    %c0_i32_72 = arith.constant 0 : i32
    %82 = tpu.memref_slice %arg4[%c0_i32_67, %c0_i32_71, %c0_i32_72] : memref<2x256x256xf32, #tpu.memory_space<vmem>> -> memref<1x256x256xf32, #tpu.memory_space<vmem>>
    %83 = tpu.memref_squeeze %82 : memref<1x256x256xf32, #tpu.memory_space<vmem>> -> memref<256x256xf32, #tpu.memory_space<vmem>>
    %84 = tpu.memref_slice %arg5[%c0_i32_68] : memref<2x!tpu.dma_semaphore, #tpu.memory_space<semaphore_mem>> -> memref<1x!tpu.dma_semaphore, #tpu.memory_space<semaphore_mem>>
    %85 = tpu.memref_squeeze %84 : memref<1x!tpu.dma_semaphore, #tpu.memory_space<semaphore_mem>> -> memref<!tpu.dma_semaphore, #tpu.memory_space<semaphore_mem>>
    tpu.enqueue_dma source(%81 : memref<256x256xf32, #tpu.memory_space<any>>) target(%83 : memref<256x256xf32, #tpu.memory_space<vmem>>) target_semaphore(%85 : memref<!tpu.dma_semaphore, #tpu.memory_space<semaphore_mem>>)
    %c3_i32_73 = arith.constant 3 : i32
    %c1_i32_74 = arith.constant 1 : i32
    %c1_i32_75 = arith.constant 1 : i32
    %c0_i32_76 = arith.constant 0 : i32
    %c0_i32_77 = arith.constant 0 : i32
    %86 = tpu.memref_slice %arg2[%c3_i32_73, %c0_i32_76, %c0_i32_77] : memref<8x256x256xf32, #tpu.memory_space<any>> -> memref<1x256x256xf32, #tpu.memory_space<any>>
    %87 = tpu.memref_squeeze %86 : memref<1x256x256xf32, #tpu.memory_space<any>> -> memref<256x256xf32, #tpu.memory_space<any>>
    %c0_i32_78 = arith.constant 0 : i32
    %c0_i32_79 = arith.constant 0 : i32
    %88 = tpu.memref_slice %arg4[%c1_i32_74, %c0_i32_78, %c0_i32_79] : memref<2x256x256xf32, #tpu.memory_space<vmem>> -> memref<1x256x256xf32, #tpu.memory_space<vmem>>
    %89 = tpu.memref_squeeze %88 : memref<1x256x256xf32, #tpu.memory_space<vmem>> -> memref<256x256xf32, #tpu.memory_space<vmem>>
    %90 = tpu.memref_slice %arg5[%c1_i32_75] : memref<2x!tpu.dma_semaphore, #tpu.memory_space<semaphore_mem>> -> memref<1x!tpu.dma_semaphore, #tpu.memory_space<semaphore_mem>>
    %91 = tpu.memref_squeeze %90 : memref<1x!tpu.dma_semaphore, #tpu.memory_space<semaphore_mem>> -> memref<!tpu.dma_semaphore, #tpu.memory_space<semaphore_mem>>
    tpu.wait_dma2 semaphore(%91 : memref<!tpu.dma_semaphore, #tpu.memory_space<semaphore_mem>>) src(%87 : memref<256x256xf32, #tpu.memory_space<any>>) dst(%89 : memref<256x256xf32, #tpu.memory_space<vmem>>)
    %c1_80 = arith.constant 1 : index
    %c0_81 = arith.constant 0 : index
    %c0_82 = arith.constant 0 : index
    %92 = vector.load %arg4[%c1_80, %c0_81, %c0_82] : memref<2x256x256xf32, #tpu.memory_space<vmem>>, vector<1x256x256xf32>
    %93 = vector.shape_cast %92 : vector<1x256x256xf32> to vector<256x256xf32>
    %c3 = arith.constant 3 : index
    %c0_83 = arith.constant 0 : index
    %94 = vector.load %arg1[%c3, %c0_83] : memref<8x256xf32, #tpu.memory_space<vmem>>, vector<1x256xf32>
    %cst_84 = arith.constant dense<0.000000e+00> : vector<8x256xf32>
    %95 = tpu.matmul %79, %93, %cst_84 {dimension_numbers = #tpu.dot_dimension_numbers<[1], [0], [0], [1], [0, 0, 1, 1], [], []>} : vector<8x256xf32>, vector<256x256xf32>, vector<8x256xf32> -> vector<8x256xf32>
    %96 = vector.broadcast %94 : vector<1x256xf32> to vector<8x256xf32>
    %97 = arith.addf %95, %96 : vector<8x256xf32>
    %cst_85 = arith.constant 2.000000e-01 : f32
    %98 = vector.broadcast %cst_85 : f32 to vector<8x256xf32>
    %99 = arith.mulf %98, %97 : vector<8x256xf32>
    %100 = arith.maximumf %97, %99 : vector<8x256xf32>
    %c5_i32 = arith.constant 5 : i32
    %c1_i32_86 = arith.constant 1 : i32
    %c1_i32_87 = arith.constant 1 : i32
    %c0_i32_88 = arith.constant 0 : i32
    %c0_i32_89 = arith.constant 0 : i32
    %101 = tpu.memref_slice %arg2[%c5_i32, %c0_i32_88, %c0_i32_89] : memref<8x256x256xf32, #tpu.memory_space<any>> -> memref<1x256x256xf32, #tpu.memory_space<any>>
    %102 = tpu.memref_squeeze %101 : memref<1x256x256xf32, #tpu.memory_space<any>> -> memref<256x256xf32, #tpu.memory_space<any>>
    %c0_i32_90 = arith.constant 0 : i32
    %c0_i32_91 = arith.constant 0 : i32
    %103 = tpu.memref_slice %arg4[%c1_i32_86, %c0_i32_90, %c0_i32_91] : memref<2x256x256xf32, #tpu.memory_space<vmem>> -> memref<1x256x256xf32, #tpu.memory_space<vmem>>
    %104 = tpu.memref_squeeze %103 : memref<1x256x256xf32, #tpu.memory_space<vmem>> -> memref<256x256xf32, #tpu.memory_space<vmem>>
    %105 = tpu.memref_slice %arg5[%c1_i32_87] : memref<2x!tpu.dma_semaphore, #tpu.memory_space<semaphore_mem>> -> memref<1x!tpu.dma_semaphore, #tpu.memory_space<semaphore_mem>>
    %106 = tpu.memref_squeeze %105 : memref<1x!tpu.dma_semaphore, #tpu.memory_space<semaphore_mem>> -> memref<!tpu.dma_semaphore, #tpu.memory_space<semaphore_mem>>
    tpu.enqueue_dma source(%102 : memref<256x256xf32, #tpu.memory_space<any>>) target(%104 : memref<256x256xf32, #tpu.memory_space<vmem>>) target_semaphore(%106 : memref<!tpu.dma_semaphore, #tpu.memory_space<semaphore_mem>>)
    %c4_i32_92 = arith.constant 4 : i32
    %c0_i32_93 = arith.constant 0 : i32
    %c0_i32_94 = arith.constant 0 : i32
    %c0_i32_95 = arith.constant 0 : i32
    %c0_i32_96 = arith.constant 0 : i32
    %107 = tpu.memref_slice %arg2[%c4_i32_92, %c0_i32_95, %c0_i32_96] : memref<8x256x256xf32, #tpu.memory_space<any>> -> memref<1x256x256xf32, #tpu.memory_space<any>>
    %108 = tpu.memref_squeeze %107 : memref<1x256x256xf32, #tpu.memory_space<any>> -> memref<256x256xf32, #tpu.memory_space<any>>
    %c0_i32_97 = arith.constant 0 : i32
    %c0_i32_98 = arith.constant 0 : i32
    %109 = tpu.memref_slice %arg4[%c0_i32_93, %c0_i32_97, %c0_i32_98] : memref<2x256x256xf32, #tpu.memory_space<vmem>> -> memref<1x256x256xf32, #tpu.memory_space<vmem>>
    %110 = tpu.memref_squeeze %109 : memref<1x256x256xf32, #tpu.memory_space<vmem>> -> memref<256x256xf32, #tpu.memory_space<vmem>>
    %111 = tpu.memref_slice %arg5[%c0_i32_94] : memref<2x!tpu.dma_semaphore, #tpu.memory_space<semaphore_mem>> -> memref<1x!tpu.dma_semaphore, #tpu.memory_space<semaphore_mem>>
    %112 = tpu.memref_squeeze %111 : memref<1x!tpu.dma_semaphore, #tpu.memory_space<semaphore_mem>> -> memref<!tpu.dma_semaphore, #tpu.memory_space<semaphore_mem>>
    tpu.wait_dma2 semaphore(%112 : memref<!tpu.dma_semaphore, #tpu.memory_space<semaphore_mem>>) src(%108 : memref<256x256xf32, #tpu.memory_space<any>>) dst(%110 : memref<256x256xf32, #tpu.memory_space<vmem>>)
    %c0_99 = arith.constant 0 : index
    %c0_100 = arith.constant 0 : index
    %c0_101 = arith.constant 0 : index
    %113 = vector.load %arg4[%c0_99, %c0_100, %c0_101] : memref<2x256x256xf32, #tpu.memory_space<vmem>>, vector<1x256x256xf32>
    %114 = vector.shape_cast %113 : vector<1x256x256xf32> to vector<256x256xf32>
    %c4 = arith.constant 4 : index
    %c0_102 = arith.constant 0 : index
    %115 = vector.load %arg1[%c4, %c0_102] : memref<8x256xf32, #tpu.memory_space<vmem>>, vector<1x256xf32>
    %cst_103 = arith.constant dense<0.000000e+00> : vector<8x256xf32>
    %116 = tpu.matmul %100, %114, %cst_103 {dimension_numbers = #tpu.dot_dimension_numbers<[1], [0], [0], [1], [0, 0, 1, 1], [], []>} : vector<8x256xf32>, vector<256x256xf32>, vector<8x256xf32> -> vector<8x256xf32>
    %117 = vector.broadcast %115 : vector<1x256xf32> to vector<8x256xf32>
    %118 = arith.addf %116, %117 : vector<8x256xf32>
    %cst_104 = arith.constant 2.000000e-01 : f32
    %119 = vector.broadcast %cst_104 : f32 to vector<8x256xf32>
    %120 = arith.mulf %119, %118 : vector<8x256xf32>
    %121 = arith.maximumf %118, %120 : vector<8x256xf32>
    %c6_i32 = arith.constant 6 : i32
    %c0_i32_105 = arith.constant 0 : i32
    %c0_i32_106 = arith.constant 0 : i32
    %c0_i32_107 = arith.constant 0 : i32
    %c0_i32_108 = arith.constant 0 : i32
    %122 = tpu.memref_slice %arg2[%c6_i32, %c0_i32_107, %c0_i32_108] : memref<8x256x256xf32, #tpu.memory_space<any>> -> memref<1x256x256xf32, #tpu.memory_space<any>>
    %123 = tpu.memref_squeeze %122 : memref<1x256x256xf32, #tpu.memory_space<any>> -> memref<256x256xf32, #tpu.memory_space<any>>
    %c0_i32_109 = arith.constant 0 : i32
    %c0_i32_110 = arith.constant 0 : i32
    %124 = tpu.memref_slice %arg4[%c0_i32_105, %c0_i32_109, %c0_i32_110] : memref<2x256x256xf32, #tpu.memory_space<vmem>> -> memref<1x256x256xf32, #tpu.memory_space<vmem>>
    %125 = tpu.memref_squeeze %124 : memref<1x256x256xf32, #tpu.memory_space<vmem>> -> memref<256x256xf32, #tpu.memory_space<vmem>>
    %126 = tpu.memref_slice %arg5[%c0_i32_106] : memref<2x!tpu.dma_semaphore, #tpu.memory_space<semaphore_mem>> -> memref<1x!tpu.dma_semaphore, #tpu.memory_space<semaphore_mem>>
    %127 = tpu.memref_squeeze %126 : memref<1x!tpu.dma_semaphore, #tpu.memory_space<semaphore_mem>> -> memref<!tpu.dma_semaphore, #tpu.memory_space<semaphore_mem>>
    tpu.enqueue_dma source(%123 : memref<256x256xf32, #tpu.memory_space<any>>) target(%125 : memref<256x256xf32, #tpu.memory_space<vmem>>) target_semaphore(%127 : memref<!tpu.dma_semaphore, #tpu.memory_space<semaphore_mem>>)
    %c5_i32_111 = arith.constant 5 : i32
    %c1_i32_112 = arith.constant 1 : i32
    %c1_i32_113 = arith.constant 1 : i32
    %c0_i32_114 = arith.constant 0 : i32
    %c0_i32_115 = arith.constant 0 : i32
    %128 = tpu.memref_slice %arg2[%c5_i32_111, %c0_i32_114, %c0_i32_115] : memref<8x256x256xf32, #tpu.memory_space<any>> -> memref<1x256x256xf32, #tpu.memory_space<any>>
    %129 = tpu.memref_squeeze %128 : memref<1x256x256xf32, #tpu.memory_space<any>> -> memref<256x256xf32, #tpu.memory_space<any>>
    %c0_i32_116 = arith.constant 0 : i32
    %c0_i32_117 = arith.constant 0 : i32
    %130 = tpu.memref_slice %arg4[%c1_i32_112, %c0_i32_116, %c0_i32_117] : memref<2x256x256xf32, #tpu.memory_space<vmem>> -> memref<1x256x256xf32, #tpu.memory_space<vmem>>
    %131 = tpu.memref_squeeze %130 : memref<1x256x256xf32, #tpu.memory_space<vmem>> -> memref<256x256xf32, #tpu.memory_space<vmem>>
    %132 = tpu.memref_slice %arg5[%c1_i32_113] : memref<2x!tpu.dma_semaphore, #tpu.memory_space<semaphore_mem>> -> memref<1x!tpu.dma_semaphore, #tpu.memory_space<semaphore_mem>>
    %133 = tpu.memref_squeeze %132 : memref<1x!tpu.dma_semaphore, #tpu.memory_space<semaphore_mem>> -> memref<!tpu.dma_semaphore, #tpu.memory_space<semaphore_mem>>
    tpu.wait_dma2 semaphore(%133 : memref<!tpu.dma_semaphore, #tpu.memory_space<semaphore_mem>>) src(%129 : memref<256x256xf32, #tpu.memory_space<any>>) dst(%131 : memref<256x256xf32, #tpu.memory_space<vmem>>)
    %c1_118 = arith.constant 1 : index
    %c0_119 = arith.constant 0 : index
    %c0_120 = arith.constant 0 : index
    %134 = vector.load %arg4[%c1_118, %c0_119, %c0_120] : memref<2x256x256xf32, #tpu.memory_space<vmem>>, vector<1x256x256xf32>
    %135 = vector.shape_cast %134 : vector<1x256x256xf32> to vector<256x256xf32>
    %c5 = arith.constant 5 : index
    %c0_121 = arith.constant 0 : index
    %136 = vector.load %arg1[%c5, %c0_121] : memref<8x256xf32, #tpu.memory_space<vmem>>, vector<1x256xf32>
    %cst_122 = arith.constant dense<0.000000e+00> : vector<8x256xf32>
    %137 = tpu.matmul %121, %135, %cst_122 {dimension_numbers = #tpu.dot_dimension_numbers<[1], [0], [0], [1], [0, 0, 1, 1], [], []>} : vector<8x256xf32>, vector<256x256xf32>, vector<8x256xf32> -> vector<8x256xf32>
    %138 = vector.broadcast %136 : vector<1x256xf32> to vector<8x256xf32>
    %139 = arith.addf %137, %138 : vector<8x256xf32>
    %cst_123 = arith.constant 2.000000e-01 : f32
    %140 = vector.broadcast %cst_123 : f32 to vector<8x256xf32>
    %141 = arith.mulf %140, %139 : vector<8x256xf32>
    %142 = arith.maximumf %139, %141 : vector<8x256xf32>
    %c7_i32 = arith.constant 7 : i32
    %c1_i32_124 = arith.constant 1 : i32
    %c1_i32_125 = arith.constant 1 : i32
    %c0_i32_126 = arith.constant 0 : i32
    %c0_i32_127 = arith.constant 0 : i32
    %143 = tpu.memref_slice %arg2[%c7_i32, %c0_i32_126, %c0_i32_127] : memref<8x256x256xf32, #tpu.memory_space<any>> -> memref<1x256x256xf32, #tpu.memory_space<any>>
    %144 = tpu.memref_squeeze %143 : memref<1x256x256xf32, #tpu.memory_space<any>> -> memref<256x256xf32, #tpu.memory_space<any>>
    %c0_i32_128 = arith.constant 0 : i32
    %c0_i32_129 = arith.constant 0 : i32
    %145 = tpu.memref_slice %arg4[%c1_i32_124, %c0_i32_128, %c0_i32_129] : memref<2x256x256xf32, #tpu.memory_space<vmem>> -> memref<1x256x256xf32, #tpu.memory_space<vmem>>
    %146 = tpu.memref_squeeze %145 : memref<1x256x256xf32, #tpu.memory_space<vmem>> -> memref<256x256xf32, #tpu.memory_space<vmem>>
    %147 = tpu.memref_slice %arg5[%c1_i32_125] : memref<2x!tpu.dma_semaphore, #tpu.memory_space<semaphore_mem>> -> memref<1x!tpu.dma_semaphore, #tpu.memory_space<semaphore_mem>>
    %148 = tpu.memref_squeeze %147 : memref<1x!tpu.dma_semaphore, #tpu.memory_space<semaphore_mem>> -> memref<!tpu.dma_semaphore, #tpu.memory_space<semaphore_mem>>
    tpu.enqueue_dma source(%144 : memref<256x256xf32, #tpu.memory_space<any>>) target(%146 : memref<256x256xf32, #tpu.memory_space<vmem>>) target_semaphore(%148 : memref<!tpu.dma_semaphore, #tpu.memory_space<semaphore_mem>>)
    %c6_i32_130 = arith.constant 6 : i32
    %c0_i32_131 = arith.constant 0 : i32
    %c0_i32_132 = arith.constant 0 : i32
    %c0_i32_133 = arith.constant 0 : i32
    %c0_i32_134 = arith.constant 0 : i32
    %149 = tpu.memref_slice %arg2[%c6_i32_130, %c0_i32_133, %c0_i32_134] : memref<8x256x256xf32, #tpu.memory_space<any>> -> memref<1x256x256xf32, #tpu.memory_space<any>>
    %150 = tpu.memref_squeeze %149 : memref<1x256x256xf32, #tpu.memory_space<any>> -> memref<256x256xf32, #tpu.memory_space<any>>
    %c0_i32_135 = arith.constant 0 : i32
    %c0_i32_136 = arith.constant 0 : i32
    %151 = tpu.memref_slice %arg4[%c0_i32_131, %c0_i32_135, %c0_i32_136] : memref<2x256x256xf32, #tpu.memory_space<vmem>> -> memref<1x256x256xf32, #tpu.memory_space<vmem>>
    %152 = tpu.memref_squeeze %151 : memref<1x256x256xf32, #tpu.memory_space<vmem>> -> memref<256x256xf32, #tpu.memory_space<vmem>>
    %153 = tpu.memref_slice %arg5[%c0_i32_132] : memref<2x!tpu.dma_semaphore, #tpu.memory_space<semaphore_mem>> -> memref<1x!tpu.dma_semaphore, #tpu.memory_space<semaphore_mem>>
    %154 = tpu.memref_squeeze %153 : memref<1x!tpu.dma_semaphore, #tpu.memory_space<semaphore_mem>> -> memref<!tpu.dma_semaphore, #tpu.memory_space<semaphore_mem>>
    tpu.wait_dma2 semaphore(%154 : memref<!tpu.dma_semaphore, #tpu.memory_space<semaphore_mem>>) src(%150 : memref<256x256xf32, #tpu.memory_space<any>>) dst(%152 : memref<256x256xf32, #tpu.memory_space<vmem>>)
    %c0_137 = arith.constant 0 : index
    %c0_138 = arith.constant 0 : index
    %c0_139 = arith.constant 0 : index
    %155 = vector.load %arg4[%c0_137, %c0_138, %c0_139] : memref<2x256x256xf32, #tpu.memory_space<vmem>>, vector<1x256x256xf32>
    %156 = vector.shape_cast %155 : vector<1x256x256xf32> to vector<256x256xf32>
    %c6 = arith.constant 6 : index
    %c0_140 = arith.constant 0 : index
    %157 = vector.load %arg1[%c6, %c0_140] : memref<8x256xf32, #tpu.memory_space<vmem>>, vector<1x256xf32>
    %cst_141 = arith.constant dense<0.000000e+00> : vector<8x256xf32>
    %158 = tpu.matmul %142, %156, %cst_141 {dimension_numbers = #tpu.dot_dimension_numbers<[1], [0], [0], [1], [0, 0, 1, 1], [], []>} : vector<8x256xf32>, vector<256x256xf32>, vector<8x256xf32> -> vector<8x256xf32>
    %159 = vector.broadcast %157 : vector<1x256xf32> to vector<8x256xf32>
    %160 = arith.addf %158, %159 : vector<8x256xf32>
    %cst_142 = arith.constant 2.000000e-01 : f32
    %161 = vector.broadcast %cst_142 : f32 to vector<8x256xf32>
    %162 = arith.mulf %161, %160 : vector<8x256xf32>
    %163 = arith.maximumf %160, %162 : vector<8x256xf32>
    %c7_i32_143 = arith.constant 7 : i32
    %c1_i32_144 = arith.constant 1 : i32
    %c1_i32_145 = arith.constant 1 : i32
    %c0_i32_146 = arith.constant 0 : i32
    %c0_i32_147 = arith.constant 0 : i32
    %164 = tpu.memref_slice %arg2[%c7_i32_143, %c0_i32_146, %c0_i32_147] : memref<8x256x256xf32, #tpu.memory_space<any>> -> memref<1x256x256xf32, #tpu.memory_space<any>>
    %165 = tpu.memref_squeeze %164 : memref<1x256x256xf32, #tpu.memory_space<any>> -> memref<256x256xf32, #tpu.memory_space<any>>
    %c0_i32_148 = arith.constant 0 : i32
    %c0_i32_149 = arith.constant 0 : i32
    %166 = tpu.memref_slice %arg4[%c1_i32_144, %c0_i32_148, %c0_i32_149] : memref<2x256x256xf32, #tpu.memory_space<vmem>> -> memref<1x256x256xf32, #tpu.memory_space<vmem>>
    %167 = tpu.memref_squeeze %166 : memref<1x256x256xf32, #tpu.memory_space<vmem>> -> memref<256x256xf32, #tpu.memory_space<vmem>>
    %168 = tpu.memref_slice %arg5[%c1_i32_145] : memref<2x!tpu.dma_semaphore, #tpu.memory_space<semaphore_mem>> -> memref<1x!tpu.dma_semaphore, #tpu.memory_space<semaphore_mem>>
    %169 = tpu.memref_squeeze %168 : memref<1x!tpu.dma_semaphore, #tpu.memory_space<semaphore_mem>> -> memref<!tpu.dma_semaphore, #tpu.memory_space<semaphore_mem>>
    tpu.wait_dma2 semaphore(%169 : memref<!tpu.dma_semaphore, #tpu.memory_space<semaphore_mem>>) src(%165 : memref<256x256xf32, #tpu.memory_space<any>>) dst(%167 : memref<256x256xf32, #tpu.memory_space<vmem>>)
    %c1_150 = arith.constant 1 : index
    %c0_151 = arith.constant 0 : index
    %c0_152 = arith.constant 0 : index
    %170 = vector.load %arg4[%c1_150, %c0_151, %c0_152] : memref<2x256x256xf32, #tpu.memory_space<vmem>>, vector<1x256x256xf32>
    %171 = vector.shape_cast %170 : vector<1x256x256xf32> to vector<256x256xf32>
    %c7 = arith.constant 7 : index
    %c0_153 = arith.constant 0 : index
    %172 = vector.load %arg1[%c7, %c0_153] : memref<8x256xf32, #tpu.memory_space<vmem>>, vector<1x256xf32>
    %cst_154 = arith.constant dense<0.000000e+00> : vector<8x256xf32>
    %173 = tpu.matmul %163, %171, %cst_154 {dimension_numbers = #tpu.dot_dimension_numbers<[1], [0], [0], [1], [0, 0, 1, 1], [], []>} : vector<8x256xf32>, vector<256x256xf32>, vector<8x256xf32> -> vector<8x256xf32>
    %174 = vector.broadcast %172 : vector<1x256xf32> to vector<8x256xf32>
    %175 = arith.addf %173, %174 : vector<8x256xf32>
    %cst_155 = arith.constant 2.000000e-01 : f32
    %176 = vector.broadcast %cst_155 : f32 to vector<8x256xf32>
    %177 = arith.mulf %176, %175 : vector<8x256xf32>
    %178 = arith.maximumf %175, %177 : vector<8x256xf32>
    %c0_156 = arith.constant 0 : index
    %c0_157 = arith.constant 0 : index
    %179 = vector.load %arg3[%c0_156, %c0_157] : memref<8x256xf32, #tpu.memory_space<vmem>>, vector<8x256xf32>
    tpu.vector_store %arg3[%c0_156, %c0_157], %178 {strides = array<i32>} : memref<8x256xf32, #tpu.memory_space<vmem>>, vector<8x256xf32>,
    return
  }
}

</mosaic_0001>

<llo_original>
// kernel: tpu_custom_call.1
$region0: #{tpu_custom_call.1}
  #allocation0 [shape = 'u32[]', space=smem, size = 0x4, offset = 0x4, fixed_abs, tag = 'smem constant byte address 0x4 - core index']
  #allocation1 [shape = 'u32[144,128]{1,0:T(1,128)}', space=vmem, size = 0x12000, scoped, tag = 'internal scratch']
  #allocation2 [shape = 'f32[2,256,256]{2,1,0:T(8,128)}', space=vmem, size = 0x80000, scoped, tag = 'scratch operand']
  #allocation3 [shape = 's32[2]{0}', space=sflag, size = 0x8, scoped, tag = 'scratch operand']
  #allocation10 [shape = 's32[]', space=sflag, size = 0x4, offset = 0, fixed_abs, tag = 'sflag constant byte address 0x0 - dummy sync flag']
  #allocation11 [shape = 's32[]', space=sflag, size = 0x4, offset = 0, fixed_abs, tag = 'sflag constant byte address 0x0 - dummy sync flag']
  #allocation12 [shape = 'u32[]', space=smem, size = 0x4, offset = 0x44, fixed_abs, tag = 'smem constant byte address 0x44 - assertion arg 0']
  #allocation13 [shape = 'u32[]', space=smem, size = 0x4, offset = 0x48, fixed_abs, tag = 'smem constant byte address 0x48 - assertion arg 1']
  #allocation14 [shape = 's32[]', space=sflag, size = 0x4, offset = 0, fixed_abs, tag = 'sflag constant byte address 0x0 - dummy sync flag']
  #allocation15 [shape = 's32[]', space=sflag, size = 0x4, offset = 0, fixed_abs, tag = 'sflag constant byte address 0x0 - dummy sync flag']
  #allocation16 [shape = 's32[]', space=sflag, size = 0x4, offset = 0, fixed_abs, tag = 'sflag constant byte address 0x0 - dummy sync flag']
  #allocation17 [shape = 's32[]', space=sflag, size = 0x4, offset = 0, fixed_abs, tag = 'sflag constant byte address 0x0 - dummy sync flag']
  #allocation18 [shape = 's32[]', space=sflag, size = 0x4, offset = 0, fixed_abs, tag = 'sflag constant byte address 0x0 - dummy sync flag']
  #allocation19 [shape = 's32[]', space=sflag, size = 0x4, offset = 0, fixed_abs, tag = 'sflag constant byte address 0x0 - dummy sync flag']
  #allocation20 [shape = 's32[]', space=sflag, size = 0x4, offset = 0, fixed_abs, tag = 'sflag constant byte address 0x0 - dummy sync flag']
  #allocation21 [shape = 's32[]', space=sflag, size = 0x4, offset = 0, fixed_abs, tag = 'sflag constant byte address 0x0 - dummy sync flag']
  #allocation22 [shape = 's32[]', space=sflag, size = 0x4, offset = 0, fixed_abs, tag = 'sflag constant byte address 0x0 - dummy sync flag']
  #allocation23 [shape = 's32[]', space=sflag, size = 0x4, offset = 0, fixed_abs, tag = 'sflag constant byte address 0x0 - dummy sync flag']
  #allocation24 [shape = 's32[]', space=sflag, size = 0x4, offset = 0, fixed_abs, tag = 'sflag constant byte address 0x0 - dummy sync flag']
  #allocation25 [shape = 's32[]', space=sflag, size = 0x4, offset = 0, fixed_abs, tag = 'sflag constant byte address 0x0 - dummy sync flag']
  #allocation26 [shape = 's32[]', space=sflag, size = 0x4, offset = 0, fixed_abs, tag = 'sflag constant byte address 0x0 - dummy sync flag']
  #allocation27 [shape = 's32[]', space=sflag, size = 0x4, offset = 0, fixed_abs, tag = 'sflag constant byte address 0x0 - dummy sync flag']
  %s0 = inlined_call_operand.hbm [shape: f32[8,256], index: 0, kind: input, shape index: {}]
  %s1 = inlined_call_operand.hbm [shape: f32[8,256], index: 1, kind: input, shape index: {}]
  %s2 = inlined_call_operand.hbm [shape: f32[8,256,256], index: 2, kind: input, shape index: {}]
  %s3 = inlined_call_operand.hbm [shape: f32[8,256], index: 3, kind: output, shape index: {}]
  %s4 = sld [smem:[#allocation0]]
  $region58: #{tpu_custom_call.1} parent=0
    _
  %s6 = ssub.s32 1, %s4
  %s7 = scalar_select 0, %s6, %s4
  $region1: #{tpu_custom_call.1} parent=0
    #allocation4 [shape = 'u8[8192]{0}', space=vmem, size = 0x2000, scoped, tag = 'input window, operand 0, single buffered']
    #allocation5 [shape = 's32[1]{0}', space=sflag, size = 0x4, scoped, tag = 'scoped memory for tpu_custom_call.1']
    #allocation6 [shape = 's32[1]{0}', space=sflag, size = 0x4, scoped, tag = 'scoped memory for tpu_custom_call.1']
    #allocation7 [shape = 'u8[8192]{0}', space=vmem, size = 0x2000, scoped, tag = 'input window, operand 1, single buffered']
    #allocation8 [shape = 's32[1]{0}', space=sflag, size = 0x4, scoped, tag = 'scoped memory for tpu_custom_call.1']
    #allocation9 [shape = 'u8[8192]{0}', space=vmem, size = 0x2000, scoped, tag = 'output window, operand 0, single buffered']
    %8 = vsyncpa [#allocation5], 0
    %9 = vsyncpa [#allocation8], 0
    %10 = vsyncpa [#allocation6], 0
    // Predicated region
    $region2: #{tpu_custom_call.1} parent=1 // pred_check
      _
    $region3: #{tpu_custom_call.1} parent=1 // pred_check_branch
      %12 = sbr.rel (0) target = $region5
    $region4: #{tpu_custom_call.1} parent=1 // pred_region
      %s14 = ssub.s32 256, 256
      %15 = vsyncadd [#allocation5], %s14
      %s17 = sshll.u32 [#allocation4], 4
      %s18 = int_to_ptr.vmem [resolvable:$true] %s17
      %20 = dma.hbm_to_vmem [thread:$0]  %s0, 256, %s18, [#allocation5]
    $region5: #{tpu_custom_call.1} parent=1 // pred_fallthru
      _
    // Predicated region
    $region6: #{tpu_custom_call.1} parent=1 // pred_check
      _
    $region7: #{tpu_custom_call.1} parent=1 // pred_check_branch
      %22 = sbr.rel (0) target = $region9
    $region8: #{tpu_custom_call.1} parent=1 // pred_region
      %s24 = ssub.s32 256, 256
      %25 = vsyncadd [#allocation8], %s24
      %s27 = sshll.u32 [#allocation7], 4
      %s28 = int_to_ptr.vmem [resolvable:$true] %s27
      %30 = dma.hbm_to_vmem [thread:$0]  %s1, 256, %s28, [#allocation8]
    $region9: #{tpu_custom_call.1} parent=1 // pred_fallthru
      _
    // Predicated region
    $region10: #{tpu_custom_call.1} parent=1 // pred_check
      _
    $region11: #{tpu_custom_call.1} parent=1 // pred_check_branch
      %32 = sbr.rel (0) target = $region13
    $region12: #{tpu_custom_call.1} parent=1 // pred_region
      %33 = dma.done [#allocation5], 256
    $region13: #{tpu_custom_call.1} parent=1 // pred_fallthru
      _
    // Predicated region
    $region14: #{tpu_custom_call.1} parent=1 // pred_check
      _
    $region15: #{tpu_custom_call.1} parent=1 // pred_check_branch
      %35 = sbr.rel (0) target = $region17
    $region16: #{tpu_custom_call.1} parent=1 // pred_region
      %36 = dma.done [#allocation8], 256
    $region17: #{tpu_custom_call.1} parent=1 // pred_fallthru
      _
    // Predicated region
    $region18: #{tpu_custom_call.1} parent=1 // pred_check
      _
    $region19: #{tpu_custom_call.1} parent=1 // pred_check_branch
      %38 = sbr.rel target = $region21
    $region20: #{tpu_custom_call.1} parent=1 // pred_region
      %39 = sst [smem:[#allocation12]] [#allocation11]
      %40 = sst [smem:[#allocation13]] [#allocation10]
    $region21: #{tpu_custom_call.1} parent=1 // pred_fallthru
      _
    %42 = shalt.err (0)
    %s44 = sshll.u32 [#allocation2], 4
    %s45 = int_to_ptr.vmem [resolvable:$true] %s44
    %47 = dma.hbm_to_vmem [thread:$0]  %s2, 8192, %s45, [#allocation3]
    %v48 = vld [vmem:[#allocation4] sm:$0xff]
    %v49 = vld [vmem:[#allocation4 + $0x8] sm:$0xff]
    %v50 = vmul.f32 %v48, %v48
    %v51 = vmul.f32 %v49, %v49
    %v52 = vadd.f32 %v50, %v51
    %53 = vadd.xlane.f32.xlu0 %v52
    %v54 = vpop.xlane.xlu0 %53
    %v55 = vrcp.pop 256.0
    %v56 = vmul.f32 %v54, %v55
    %v57 = vadd.f32 %v56, 1e-08
    %v58 = vrsqrt.pop %v57
    %v59 = vmul.f32 %v48, %v58
    %v60 = vmul.f32 %v49, %v58
    %s61 = scalar_lea.hbm %s2, 8192
    %s62 = scalar_lea.vmem [#allocation2], 512
    %s63 = scalar_lea.sflag [#allocation3], 1
    // Predicated region
    $region22: #{tpu_custom_call.1} parent=1 // pred_check
      _
    $region23: #{tpu_custom_call.1} parent=1 // pred_check_branch
      %65 = sbr.rel target = $region25
    $region24: #{tpu_custom_call.1} parent=1 // pred_region
      %66 = sst [smem:[#allocation12]] [#allocation15]
      %67 = sst [smem:[#allocation13]] [#allocation14]
    $region25: #{tpu_custom_call.1} parent=1 // pred_fallthru
      _
    %69 = shalt.err (0)
    %s71 = sshll.u32 %s62, 4
    %s72 = int_to_ptr.vmem [resolvable:$true] %s71
    %74 = dma.hbm_to_vmem [thread:$0]  %s61, 8192, %s72, %s63
    %s75 = smul.u32 8, 32
    %s76 = smul.u32 %s75, 2
    %s77 = sshll.u32 %s76, 4
    %78 = dma.done [#allocation3], %s77
    %v79 = vld [vmem:[#allocation2] sm:$0xff]
    %v80 = vld [vmem:[#allocation2 + $0x8] sm:$0xff]
    %v81 = vld [vmem:[#allocation2 + $0x10] sm:$0xff]
    %v82 = vld [vmem:[#allocation2 + $0x18] sm:$0xff]
    %v83 = vld [vmem:[#allocation2 + $0x20] sm:$0xff]
    %v84 = vld [vmem:[#allocation2 + $0x28] sm:$0xff]
    %v85 = vld [vmem:[#allocation2 + $0x30] sm:$0xff]
    %v86 = vld [vmem:[#allocation2 + $0x38] sm:$0xff]
    %v87 = vld [vmem:[#allocation2 + $0x40] sm:$0xff]
    %v88 = vld [vmem:[#allocation2 + $0x48] sm:$0xff]
    %v89 = vld [vmem:[#allocation2 + $0x50] sm:$0xff]
    %v90 = vld [vmem:[#allocation2 + $0x58] sm:$0xff]
    %v91 = vld [vmem:[#allocation2 + $0x60] sm:$0xff]
    %v92 = vld [vmem:[#allocation2 + $0x68] sm:$0xff]
    %v93 = vld [vmem:[#allocation2 + $0x70] sm:$0xff]
    %v94 = vld [vmem:[#allocation2 + $0x78] sm:$0xff]
    %v95 = vld [vmem:[#allocation2 + $0x80] sm:$0xff]
    %v96 = vld [vmem:[#allocation2 + $0x88] sm:$0xff]
    %v97 = vld [vmem:[#allocation2 + $0x90] sm:$0xff]
    %v98 = vld [vmem:[#allocation2 + $0x98] sm:$0xff]
    %v99 = vld [vmem:[#allocation2 + $0xa0] sm:$0xff]
    %v100 = vld [vmem:[#allocation2 + $0xa8] sm:$0xff]
    %v101 = vld [vmem:[#allocation2 + $0xb0] sm:$0xff]
    %v102 = vld [vmem:[#allocation2 + $0xb8] sm:$0xff]
    %v103 = vld [vmem:[#allocation2 + $0xc0] sm:$0xff]
    %v104 = vld [vmem:[#allocation2 + $0xc8] sm:$0xff]
    %v105 = vld [vmem:[#allocation2 + $0xd0] sm:$0xff]
    %v106 = vld [vmem:[#allocation2 + $0xd8] sm:$0xff]
    %v107 = vld [vmem:[#allocation2 + $0xe0] sm:$0xff]
    %v108 = vld [vmem:[#allocation2 + $0xe8] sm:$0xff]
    %v109 = vld [vmem:[#allocation2 + $0xf0] sm:$0xff]
    %v110 = vld [vmem:[#allocation2 + $0xf8] sm:$0xff]
    %v111 = vld [vmem:[#allocation2 + $0x100] sm:$0xff]
    %v112 = vld [vmem:[#allocation2 + $0x108] sm:$0xff]
    %v113 = vld [vmem:[#allocation2 + $0x110] sm:$0xff]
    %v114 = vld [vmem:[#allocation2 + $0x118] sm:$0xff]
    %v115 = vld [vmem:[#allocation2 + $0x120] sm:$0xff]
    %v116 = vld [vmem:[#allocation2 + $0x128] sm:$0xff]
    %v117 = vld [vmem:[#allocation2 + $0x130] sm:$0xff]
    %v118 = vld [vmem:[#allocation2 + $0x138] sm:$0xff]
    %v119 = vld [vmem:[#allocation2 + $0x140] sm:$0xff]
    %v120 = vld [vmem:[#allocation2 + $0x148] sm:$0xff]
    %v121 = vld [vmem:[#allocation2 + $0x150] sm:$0xff]
    %v122 = vld [vmem:[#allocation2 + $0x158] sm:$0xff]
    %v123 = vld [vmem:[#allocation2 + $0x160] sm:$0xff]
    %v124 = vld [vmem:[#allocation2 + $0x168] sm:$0xff]
    %v125 = vld [vmem:[#allocation2 + $0x170] sm:$0xff]
    %v126 = vld [vmem:[#allocation2 + $0x178] sm:$0xff]
    %v127 = vld [vmem:[#allocation2 + $0x180] sm:$0xff]
    %v128 = vld [vmem:[#allocation2 + $0x188] sm:$0xff]
    %v129 = vld [vmem:[#allocation2 + $0x190] sm:$0xff]
    %v130 = vld [vmem:[#allocation2 + $0x198] sm:$0xff]
    %v131 = vld [vmem:[#allocation2 + $0x1a0] sm:$0xff]
    %v132 = vld [vmem:[#allocation2 + $0x1a8] sm:$0xff]
    %v133 = vld [vmem:[#allocation2 + $0x1b0] sm:$0xff]
    %v134 = vld [vmem:[#allocation2 + $0x1b8] sm:$0xff]
    %v135 = vld [vmem:[#allocation2 + $0x1c0] sm:$0xff]
    %v136 = vld [vmem:[#allocation2 + $0x1c8] sm:$0xff]
    %v137 = vld [vmem:[#allocation2 + $0x1d0] sm:$0xff]
    %v138 = vld [vmem:[#allocation2 + $0x1d8] sm:$0xff]
    %v139 = vld [vmem:[#allocation2 + $0x1e0] sm:$0xff]
    %v140 = vld [vmem:[#allocation2 + $0x1e8] sm:$0xff]
    %v141 = vld [vmem:[#allocation2 + $0x1f0] sm:$0xff]
    %v142 = vld [vmem:[#allocation2 + $0x1f8] sm:$0xff]
    %v143 = vld [vmem:[#allocation7] ss:$8 sm:$0x3]
    %v145 = vlaneseq
    %v146 = vshrl.u32 %v145, 7
    %v147 = vsub.s32 0, %v146
    %v148 = vrot.slane %v143, %v147
    %v149 = vlaneseq
    %v150 = vshrl.u32 %v149, 7
    %v151 = vsub.s32 1, %v150
    %v152 = vrot.slane %v143, %v151
    %155 = vmatprep.subr.mxu0 %v80
    %156 = vmatpush1.msra.mxu0 %v79
    %157 = vmatprep.subr.mxu0 %v82
    %158 = vmatpush1.msra.mxu0 %v81
    %159 = vmatprep.subr.mxu0 %v84
    %160 = vmatpush1.msra.mxu0 %v83
    %161 = vmatprep.subr.mxu0 %v86
    %162 = vmatpush1.msra.mxu0 %v85
    %163 = vmatprep.subr.mxu0 %v88
    %164 = vmatpush1.msra.mxu0 %v87
    %165 = vmatprep.subr.mxu0 %v90
    %166 = vmatpush1.msra.mxu0 %v89
    %167 = vmatprep.subr.mxu0 %v92
    %168 = vmatpush1.msra.mxu0 %v91
    %169 = vmatprep.subr.mxu0 %v94
    %170 = vmatpush1.msra.mxu0 %v93
    %171 = vmatprep.subr.mxu0 %v96
    %172 = vmatpush1.msra.mxu0 %v95
    %173 = vmatprep.subr.mxu0 %v98
    %174 = vmatpush1.msra.mxu0 %v97
    %175 = vmatprep.subr.mxu0 %v100
    %176 = vmatpush1.msra.mxu0 %v99
    %177 = vmatprep.subr.mxu0 %v102
    %178 = vmatpush1.msra.mxu0 %v101
    %179 = vmatprep.subr.mxu0 %v104
    %180 = vmatpush1.msra.mxu0 %v103
    %181 = vmatprep.subr.mxu0 %v106
    %182 = vmatpush1.msra.mxu0 %v105
    %183 = vmatprep.subr.mxu0 %v108
    %184 = vmatpush1.msra.mxu0 %v107
    %185 = vmatprep.subr.mxu0 %v110
    %186 = vmatpush1.msra.mxu0 %v109
    %187 = vmatprep.subr.mxu0 %v112
    %188 = vmatpush1.msra.mxu0 %v111
    %189 = vmatprep.subr.mxu0 %v114
    %190 = vmatpush1.msra.mxu0 %v113
    %191 = vmatprep.subr.mxu0 %v116
    %192 = vmatpush1.msra.mxu0 %v115
    %193 = vmatprep.subr.mxu0 %v118
    %194 = vmatpush1.msra.mxu0 %v117
    %195 = vmatprep.subr.mxu0 %v120
    %196 = vmatpush1.msra.mxu0 %v119
    %197 = vmatprep.subr.mxu0 %v122
    %198 = vmatpush1.msra.mxu0 %v121
    %199 = vmatprep.subr.mxu0 %v124
    %200 = vmatpush1.msra.mxu0 %v123
    %201 = vmatprep.subr.mxu0 %v126
    %202 = vmatpush1.msra.mxu0 %v125
    %203 = vmatprep.subr.mxu0 %v128
    %204 = vmatpush1.msra.mxu0 %v127
    %205 = vmatprep.subr.mxu0 %v130
    %206 = vmatpush1.msra.mxu0 %v129
    %207 = vmatprep.subr.mxu0 %v132
    %208 = vmatpush1.msra.mxu0 %v131
    %209 = vmatprep.subr.mxu0 %v134
    %210 = vmatpush1.msra.mxu0 %v133
    %211 = vmatprep.subr.mxu0 %v136
    %212 = vmatpush1.msra.mxu0 %v135
    %213 = vmatprep.subr.mxu0 %v138
    %214 = vmatpush1.msra.mxu0 %v137
    %215 = vmatprep.subr.mxu0 %v140
    %216 = vmatpush1.msra.mxu0 %v139
    %217 = vmatprep.subr.mxu0 %v142
    %218 = vmatpush1.msra.mxu0 %v141
    %219 = vmatprep.mubr.f32.mxu0 %v60
    %220 = vmatmul.mubr.f32.gmra.mrb[0].mxu0 %v59
    %v221 = vpop.f32.mrb[0].mxu0
    %v222 = vadd.f32 %v148, %v221
    %v223 = vpop.f32.mrb[0].mxu0
    %v224 = vadd.f32 %v152, %v223
    %225 = vdwg.mxu0
    %v226 = vmul.f32 %v222, 0.2
    %v227 = vmul.f32 %v224, 0.2
    %v228 = vmax.f32 %v222, %v226
    %v229 = vmax.f32 %v224, %v227
    %s230 = scalar_lea.hbm %s2, 16384
    // Predicated region
    $region26: #{tpu_custom_call.1} parent=1 // pred_check
      _
    $region27: #{tpu_custom_call.1} parent=1 // pred_check_branch
      %232 = sbr.rel target = $region29
    $region28: #{tpu_custom_call.1} parent=1 // pred_region
      %233 = sst [smem:[#allocation12]] [#allocation17]
      %234 = sst [smem:[#allocation13]] [#allocation16]
    $region29: #{tpu_custom_call.1} parent=1 // pred_fallthru
      _
    %236 = shalt.err (0)
    %s238 = sshll.u32 [#allocation2], 4
    %s239 = int_to_ptr.vmem [resolvable:$true] %s238
    %241 = dma.hbm_to_vmem [thread:$0]  %s230, 8192, %s239, [#allocation3]
    %s242 = sshll.u32 %s76, 4
    %243 = dma.done %s63, %s242
    %v244 = vld [vmem:[%s62] sm:$0xff]
    %v245 = vld [vmem:[%s62 + $0x8] sm:$0xff]
    %v246 = vld [vmem:[%s62 + $0x10] sm:$0xff]
    %v247 = vld [vmem:[%s62 + $0x18] sm:$0xff]
    %v248 = vld [vmem:[%s62 + $0x20] sm:$0xff]
    %v249 = vld [vmem:[%s62 + $0x28] sm:$0xff]
    %v250 = vld [vmem:[%s62 + $0x30] sm:$0xff]
    %v251 = vld [vmem:[%s62 + $0x38] sm:$0xff]
    %v252 = vld [vmem:[%s62 + $0x40] sm:$0xff]
    %v253 = vld [vmem:[%s62 + $0x48] sm:$0xff]
    %v254 = vld [vmem:[%s62 + $0x50] sm:$0xff]
    %v255 = vld [vmem:[%s62 + $0x58] sm:$0xff]
    %v256 = vld [vmem:[%s62 + $0x60] sm:$0xff]
    %v257 = vld [vmem:[%s62 + $0x68] sm:$0xff]
    %v258 = vld [vmem:[%s62 + $0x70] sm:$0xff]
    %v259 = vld [vmem:[%s62 + $0x78] sm:$0xff]
    %v260 = vld [vmem:[%s62 + $0x80] sm:$0xff]
    %v261 = vld [vmem:[%s62 + $0x88] sm:$0xff]
    %v262 = vld [vmem:[%s62 + $0x90] sm:$0xff]
    %v263 = vld [vmem:[%s62 + $0x98] sm:$0xff]
    %v264 = vld [vmem:[%s62 + $0xa0] sm:$0xff]
    %v265 = vld [vmem:[%s62 + $0xa8] sm:$0xff]
    %v266 = vld [vmem:[%s62 + $0xb0] sm:$0xff]
    %v267 = vld [vmem:[%s62 + $0xb8] sm:$0xff]
    %v268 = vld [vmem:[%s62 + $0xc0] sm:$0xff]
    %v269 = vld [vmem:[%s62 + $0xc8] sm:$0xff]
    %v270 = vld [vmem:[%s62 + $0xd0] sm:$0xff]
    %v271 = vld [vmem:[%s62 + $0xd8] sm:$0xff]
    %v272 = vld [vmem:[%s62 + $0xe0] sm:$0xff]
    %v273 = vld [vmem:[%s62 + $0xe8] sm:$0xff]
    %v274 = vld [vmem:[%s62 + $0xf0] sm:$0xff]
    %v275 = vld [vmem:[%s62 + $0xf8] sm:$0xff]
    %v276 = vld [vmem:[%s62 + $0x100] sm:$0xff]
    %v277 = vld [vmem:[%s62 + $0x108] sm:$0xff]
    %v278 = vld [vmem:[%s62 + $0x110] sm:$0xff]
    %v279 = vld [vmem:[%s62 + $0x118] sm:$0xff]
    %v280 = vld [vmem:[%s62 + $0x120] sm:$0xff]
    %v281 = vld [vmem:[%s62 + $0x128] sm:$0xff]
    %v282 = vld [vmem:[%s62 + $0x130] sm:$0xff]
    %v283 = vld [vmem:[%s62 + $0x138] sm:$0xff]
    %v284 = vld [vmem:[%s62 + $0x140] sm:$0xff]
    %v285 = vld [vmem:[%s62 + $0x148] sm:$0xff]
    %v286 = vld [vmem:[%s62 + $0x150] sm:$0xff]
    %v287 = vld [vmem:[%s62 + $0x158] sm:$0xff]
    %v288 = vld [vmem:[%s62 + $0x160] sm:$0xff]
    %v289 = vld [vmem:[%s62 + $0x168] sm:$0xff]
    %v290 = vld [vmem:[%s62 + $0x170] sm:$0xff]
    %v291 = vld [vmem:[%s62 + $0x178] sm:$0xff]
    %v292 = vld [vmem:[%s62 + $0x180] sm:$0xff]
    %v293 = vld [vmem:[%s62 + $0x188] sm:$0xff]
    %v294 = vld [vmem:[%s62 + $0x190] sm:$0xff]
    %v295 = vld [vmem:[%s62 + $0x198] sm:$0xff]
    %v296 = vld [vmem:[%s62 + $0x1a0] sm:$0xff]
    %v297 = vld [vmem:[%s62 + $0x1a8] sm:$0xff]
    %v298 = vld [vmem:[%s62 + $0x1b0] sm:$0xff]
    %v299 = vld [vmem:[%s62 + $0x1b8] sm:$0xff]
    %v300 = vld [vmem:[%s62 + $0x1c0] sm:$0xff]
    %v301 = vld [vmem:[%s62 + $0x1c8] sm:$0xff]
    %v302 = vld [vmem:[%s62 + $0x1d0] sm:$0xff]
    %v303 = vld [vmem:[%s62 + $0x1d8] sm:$0xff]
    %v304 = vld [vmem:[%s62 + $0x1e0] sm:$0xff]
    %v305 = vld [vmem:[%s62 + $0x1e8] sm:$0xff]
    %v306 = vld [vmem:[%s62 + $0x1f0] sm:$0xff]
    %v307 = vld [vmem:[%s62 + $0x1f8] sm:$0xff]
    %s308 = scalar_lea.vmem [#allocation7], 1
    %v309 = vld [vmem:[%s308] ss:$8 sm:$0x3]
    %v311 = vlaneseq
    %v312 = vshrl.u32 %v311, 7
    %v313 = vsub.s32 0, %v312
    %v314 = vrot.slane %v309, %v313
    %v315 = vlaneseq
    %v316 = vshrl.u32 %v315, 7
    %v317 = vsub.s32 1, %v316
    %v318 = vrot.slane %v309, %v317
    %321 = vmatprep.subr.mxu0 %v245
    %322 = vmatpush1.msra.mxu0 %v244
    %323 = vmatprep.subr.mxu0 %v247
    %324 = vmatpush1.msra.mxu0 %v246
    %325 = vmatprep.subr.mxu0 %v249
    %326 = vmatpush1.msra.mxu0 %v248
    %327 = vmatprep.subr.mxu0 %v251
    %328 = vmatpush1.msra.mxu0 %v250
    %329 = vmatprep.subr.mxu0 %v253
    %330 = vmatpush1.msra.mxu0 %v252
    %331 = vmatprep.subr.mxu0 %v255
    %332 = vmatpush1.msra.mxu0 %v254
    %333 = vmatprep.subr.mxu0 %v257
    %334 = vmatpush1.msra.mxu0 %v256
    %335 = vmatprep.subr.mxu0 %v259
    %336 = vmatpush1.msra.mxu0 %v258
    %337 = vmatprep.subr.mxu0 %v261
    %338 = vmatpush1.msra.mxu0 %v260
    %339 = vmatprep.subr.mxu0 %v263
    %340 = vmatpush1.msra.mxu0 %v262
    %341 = vmatprep.subr.mxu0 %v265
    %342 = vmatpush1.msra.mxu0 %v264
    %343 = vmatprep.subr.mxu0 %v267
    %344 = vmatpush1.msra.mxu0 %v266
    %345 = vmatprep.subr.mxu0 %v269
    %346 = vmatpush1.msra.mxu0 %v268
    %347 = vmatprep.subr.mxu0 %v271
    %348 = vmatpush1.msra.mxu0 %v270
    %349 = vmatprep.subr.mxu0 %v273
    %350 = vmatpush1.msra.mxu0 %v272
    %351 = vmatprep.subr.mxu0 %v275
    %352 = vmatpush1.msra.mxu0 %v274
    %353 = vmatprep.subr.mxu0 %v277
    %354 = vmatpush1.msra.mxu0 %v276
    %355 = vmatprep.subr.mxu0 %v279
    %356 = vmatpush1.msra.mxu0 %v278
    %357 = vmatprep.subr.mxu0 %v281
    %358 = vmatpush1.msra.mxu0 %v280
    %359 = vmatprep.subr.mxu0 %v283
    %360 = vmatpush1.msra.mxu0 %v282
    %361 = vmatprep.subr.mxu0 %v285
    %362 = vmatpush1.msra.mxu0 %v284
    %363 = vmatprep.subr.mxu0 %v287
    %364 = vmatpush1.msra.mxu0 %v286
    %365 = vmatprep.subr.mxu0 %v289
    %366 = vmatpush1.msra.mxu0 %v288
    %367 = vmatprep.subr.mxu0 %v291
    %368 = vmatpush1.msra.mxu0 %v290
    %369 = vmatprep.subr.mxu0 %v293
    %370 = vmatpush1.msra.mxu0 %v292
    %371 = vmatprep.subr.mxu0 %v295
    %372 = vmatpush1.msra.mxu0 %v294
    %373 = vmatprep.subr.mxu0 %v297
    %374 = vmatpush1.msra.mxu0 %v296
    %375 = vmatprep.subr.mxu0 %v299
    %376 = vmatpush1.msra.mxu0 %v298
    %377 = vmatprep.subr.mxu0 %v301
    %378 = vmatpush1.msra.mxu0 %v300
    %379 = vmatprep.subr.mxu0 %v303
    %380 = vmatpush1.msra.mxu0 %v302
    %381 = vmatprep.subr.mxu0 %v305
    %382 = vmatpush1.msra.mxu0 %v304
    %383 = vmatprep.subr.mxu0 %v307
    %384 = vmatpush1.msra.mxu0 %v306
    %385 = vmatprep.mubr.f32.mxu0 %v229
    %386 = vmatmul.mubr.f32.gmra.mrb[0].mxu0 %v228
    %v387 = vpop.f32.mrb[0].mxu0
    %v388 = vadd.f32 %v314, %v387
    %v389 = vpop.f32.mrb[0].mxu0
    %v390 = vadd.f32 %v318, %v389
    %391 = vdwg.mxu0
    %v392 = vmul.f32 %v388, 0.2
    %v393 = vmul.f32 %v390, 0.2
    %v394 = vmax.f32 %v388, %v392
    %v395 = vmax.f32 %v390, %v393
    %s396 = scalar_lea.hbm %s2, 24576
    // Predicated region
    $region30: #{tpu_custom_call.1} parent=1 // pred_check
      _
    $region31: #{tpu_custom_call.1} parent=1 // pred_check_branch
      %398 = sbr.rel target = $region33
    $region32: #{tpu_custom_call.1} parent=1 // pred_region
      %399 = sst [smem:[#allocation12]] [#allocation19]
      %400 = sst [smem:[#allocation13]] [#allocation18]
    $region33: #{tpu_custom_call.1} parent=1 // pred_fallthru
      _
    %402 = shalt.err (0)
    %s404 = sshll.u32 %s62, 4
    %s405 = int_to_ptr.vmem [resolvable:$true] %s404
    %407 = dma.hbm_to_vmem [thread:$0]  %s396, 8192, %s405, %s63
    %s408 = sshll.u32 %s76, 4
    %409 = dma.done [#allocation3], %s408
    %v410 = vld [vmem:[#allocation2] sm:$0xff]
    %v411 = vld [vmem:[#allocation2 + $0x8] sm:$0xff]
    %v412 = vld [vmem:[#allocation2 + $0x10] sm:$0xff]
    %v413 = vld [vmem:[#allocation2 + $0x18] sm:$0xff]
    %v414 = vld [vmem:[#allocation2 + $0x20] sm:$0xff]
    %v415 = vld [vmem:[#allocation2 + $0x28] sm:$0xff]
    %v416 = vld [vmem:[#allocation2 + $0x30] sm:$0xff]
    %v417 = vld [vmem:[#allocation2 + $0x38] sm:$0xff]
    %v418 = vld [vmem:[#allocation2 + $0x40] sm:$0xff]
    %v419 = vld [vmem:[#allocation2 + $0x48] sm:$0xff]
    %v420 = vld [vmem:[#allocation2 + $0x50] sm:$0xff]
    %v421 = vld [vmem:[#allocation2 + $0x58] sm:$0xff]
    %v422 = vld [vmem:[#allocation2 + $0x60] sm:$0xff]
    %v423 = vld [vmem:[#allocation2 + $0x68] sm:$0xff]
    %v424 = vld [vmem:[#allocation2 + $0x70] sm:$0xff]
    %v425 = vld [vmem:[#allocation2 + $0x78] sm:$0xff]
    %v426 = vld [vmem:[#allocation2 + $0x80] sm:$0xff]
    %v427 = vld [vmem:[#allocation2 + $0x88] sm:$0xff]
    %v428 = vld [vmem:[#allocation2 + $0x90] sm:$0xff]
    %v429 = vld [vmem:[#allocation2 + $0x98] sm:$0xff]
    %v430 = vld [vmem:[#allocation2 + $0xa0] sm:$0xff]
    %v431 = vld [vmem:[#allocation2 + $0xa8] sm:$0xff]
    %v432 = vld [vmem:[#allocation2 + $0xb0] sm:$0xff]
    %v433 = vld [vmem:[#allocation2 + $0xb8] sm:$0xff]
    %v434 = vld [vmem:[#allocation2 + $0xc0] sm:$0xff]
    %v435 = vld [vmem:[#allocation2 + $0xc8] sm:$0xff]
    %v436 = vld [vmem:[#allocation2 + $0xd0] sm:$0xff]
    %v437 = vld [vmem:[#allocation2 + $0xd8] sm:$0xff]
    %v438 = vld [vmem:[#allocation2 + $0xe0] sm:$0xff]
    %v439 = vld [vmem:[#allocation2 + $0xe8] sm:$0xff]
    %v440 = vld [vmem:[#allocation2 + $0xf0] sm:$0xff]
    %v441 = vld [vmem:[#allocation2 + $0xf8] sm:$0xff]
    %v442 = vld [vmem:[#allocation2 + $0x100] sm:$0xff]
    %v443 = vld [vmem:[#allocation2 + $0x108] sm:$0xff]
    %v444 = vld [vmem:[#allocation2 + $0x110] sm:$0xff]
    %v445 = vld [vmem:[#allocation2 + $0x118] sm:$0xff]
    %v446 = vld [vmem:[#allocation2 + $0x120] sm:$0xff]
    %v447 = vld [vmem:[#allocation2 + $0x128] sm:$0xff]
    %v448 = vld [vmem:[#allocation2 + $0x130] sm:$0xff]
    %v449 = vld [vmem:[#allocation2 + $0x138] sm:$0xff]
    %v450 = vld [vmem:[#allocation2 + $0x140] sm:$0xff]
    %v451 = vld [vmem:[#allocation2 + $0x148] sm:$0xff]
    %v452 = vld [vmem:[#allocation2 + $0x150] sm:$0xff]
    %v453 = vld [vmem:[#allocation2 + $0x158] sm:$0xff]
    %v454 = vld [vmem:[#allocation2 + $0x160] sm:$0xff]
    %v455 = vld [vmem:[#allocation2 + $0x168] sm:$0xff]
    %v456 = vld [vmem:[#allocation2 + $0x170] sm:$0xff]
    %v457 = vld [vmem:[#allocation2 + $0x178] sm:$0xff]
    %v458 = vld [vmem:[#allocation2 + $0x180] sm:$0xff]
    %v459 = vld [vmem:[#allocation2 + $0x188] sm:$0xff]
    %v460 = vld [vmem:[#allocation2 + $0x190] sm:$0xff]
    %v461 = vld [vmem:[#allocation2 + $0x198] sm:$0xff]
    %v462 = vld [vmem:[#allocation2 + $0x1a0] sm:$0xff]
    %v463 = vld [vmem:[#allocation2 + $0x1a8] sm:$0xff]
    %v464 = vld [vmem:[#allocation2 + $0x1b0] sm:$0xff]
    %v465 = vld [vmem:[#allocation2 + $0x1b8] sm:$0xff]
    %v466 = vld [vmem:[#allocation2 + $0x1c0] sm:$0xff]
    %v467 = vld [vmem:[#allocation2 + $0x1c8] sm:$0xff]
    %v468 = vld [vmem:[#allocation2 + $0x1d0] sm:$0xff]
    %v469 = vld [vmem:[#allocation2 + $0x1d8] sm:$0xff]
    %v470 = vld [vmem:[#allocation2 + $0x1e0] sm:$0xff]
    %v471 = vld [vmem:[#allocation2 + $0x1e8] sm:$0xff]
    %v472 = vld [vmem:[#allocation2 + $0x1f0] sm:$0xff]
    %v473 = vld [vmem:[#allocation2 + $0x1f8] sm:$0xff]
    %s474 = scalar_lea.vmem [#allocation7], 2
    %v475 = vld [vmem:[%s474] ss:$8 sm:$0x3]
    %v477 = vlaneseq
    %v478 = vshrl.u32 %v477, 7
    %v479 = vsub.s32 0, %v478
    %v480 = vrot.slane %v475, %v479
    %v481 = vlaneseq
    %v482 = vshrl.u32 %v481, 7
    %v483 = vsub.s32 1, %v482
    %v484 = vrot.slane %v475, %v483
    %487 = vmatprep.subr.mxu0 %v411
    %488 = vmatpush1.msra.mxu0 %v410
    %489 = vmatprep.subr.mxu0 %v413
    %490 = vmatpush1.msra.mxu0 %v412
    %491 = vmatprep.subr.mxu0 %v415
    %492 = vmatpush1.msra.mxu0 %v414
    %493 = vmatprep.subr.mxu0 %v417
    %494 = vmatpush1.msra.mxu0 %v416
    %495 = vmatprep.subr.mxu0 %v419
    %496 = vmatpush1.msra.mxu0 %v418
    %497 = vmatprep.subr.mxu0 %v421
    %498 = vmatpush1.msra.mxu0 %v420
    %499 = vmatprep.subr.mxu0 %v423
    %500 = vmatpush1.msra.mxu0 %v422
    %501 = vmatprep.subr.mxu0 %v425
    %502 = vmatpush1.msra.mxu0 %v424
    %503 = vmatprep.subr.mxu0 %v427
    %504 = vmatpush1.msra.mxu0 %v426
    %505 = vmatprep.subr.mxu0 %v429
    %506 = vmatpush1.msra.mxu0 %v428
    %507 = vmatprep.subr.mxu0 %v431
    %508 = vmatpush1.msra.mxu0 %v430
    %509 = vmatprep.subr.mxu0 %v433
    %510 = vmatpush1.msra.mxu0 %v432
    %511 = vmatprep.subr.mxu0 %v435
    %512 = vmatpush1.msra.mxu0 %v434
    %513 = vmatprep.subr.mxu0 %v437
    %514 = vmatpush1.msra.mxu0 %v436
    %515 = vmatprep.subr.mxu0 %v439
    %516 = vmatpush1.msra.mxu0 %v438
    %517 = vmatprep.subr.mxu0 %v441
    %518 = vmatpush1.msra.mxu0 %v440
    %519 = vmatprep.subr.mxu0 %v443
    %520 = vmatpush1.msra.mxu0 %v442
    %521 = vmatprep.subr.mxu0 %v445
    %522 = vmatpush1.msra.mxu0 %v444
    %523 = vmatprep.subr.mxu0 %v447
    %524 = vmatpush1.msra.mxu0 %v446
    %525 = vmatprep.subr.mxu0 %v449
    %526 = vmatpush1.msra.mxu0 %v448
    %527 = vmatprep.subr.mxu0 %v451
    %528 = vmatpush1.msra.mxu0 %v450
    %529 = vmatprep.subr.mxu0 %v453
    %530 = vmatpush1.msra.mxu0 %v452
    %531 = vmatprep.subr.mxu0 %v455
    %532 = vmatpush1.msra.mxu0 %v454
    %533 = vmatprep.subr.mxu0 %v457
    %534 = vmatpush1.msra.mxu0 %v456
    %535 = vmatprep.subr.mxu0 %v459
    %536 = vmatpush1.msra.mxu0 %v458
    %537 = vmatprep.subr.mxu0 %v461
    %538 = vmatpush1.msra.mxu0 %v460
    %539 = vmatprep.subr.mxu0 %v463
    %540 = vmatpush1.msra.mxu0 %v462
    %541 = vmatprep.subr.mxu0 %v465
    %542 = vmatpush1.msra.mxu0 %v464
    %543 = vmatprep.subr.mxu0 %v467
    %544 = vmatpush1.msra.mxu0 %v466
    %545 = vmatprep.subr.mxu0 %v469
    %546 = vmatpush1.msra.mxu0 %v468
    %547 = vmatprep.subr.mxu0 %v471
    %548 = vmatpush1.msra.mxu0 %v470
    %549 = vmatprep.subr.mxu0 %v473
    %550 = vmatpush1.msra.mxu0 %v472
    %551 = vmatprep.mubr.f32.mxu0 %v395
    %552 = vmatmul.mubr.f32.gmra.mrb[0].mxu0 %v394
    %v553 = vpop.f32.mrb[0].mxu0
    %v554 = vadd.f32 %v480, %v553
    %v555 = vpop.f32.mrb[0].mxu0
    %v556 = vadd.f32 %v484, %v555
    %557 = vdwg.mxu0
    %v558 = vmul.f32 %v554, 0.2
    %v559 = vmul.f32 %v556, 0.2
    %v560 = vmax.f32 %v554, %v558
    %v561 = vmax.f32 %v556, %v559
    %s562 = scalar_lea.hbm %s2, 32768
    // Predicated region
    $region34: #{tpu_custom_call.1} parent=1 // pred_check
      _
    $region35: #{tpu_custom_call.1} parent=1 // pred_check_branch
      %564 = sbr.rel target = $region37
    $region36: #{tpu_custom_call.1} parent=1 // pred_region
      %565 = sst [smem:[#allocation12]] [#allocation21]
      %566 = sst [smem:[#allocation13]] [#allocation20]
    $region37: #{tpu_custom_call.1} parent=1 // pred_fallthru
      _
    %568 = shalt.err (0)
    %s570 = sshll.u32 [#allocation2], 4
    %s571 = int_to_ptr.vmem [resolvable:$true] %s570
    %573 = dma.hbm_to_vmem [thread:$0]  %s562, 8192, %s571, [#allocation3]
    %s574 = sshll.u32 %s76, 4
    %575 = dma.done %s63, %s574
    %v576 = vld [vmem:[%s62] sm:$0xff]
    %v577 = vld [vmem:[%s62 + $0x8] sm:$0xff]
    %v578 = vld [vmem:[%s62 + $0x10] sm:$0xff]
    %v579 = vld [vmem:[%s62 + $0x18] sm:$0xff]
    %v580 = vld [vmem:[%s62 + $0x20] sm:$0xff]
    %v581 = vld [vmem:[%s62 + $0x28] sm:$0xff]
    %v582 = vld [vmem:[%s62 + $0x30] sm:$0xff]
    %v583 = vld [vmem:[%s62 + $0x38] sm:$0xff]
    %v584 = vld [vmem:[%s62 + $0x40] sm:$0xff]
    %v585 = vld [vmem:[%s62 + $0x48] sm:$0xff]
    %v586 = vld [vmem:[%s62 + $0x50] sm:$0xff]
    %v587 = vld [vmem:[%s62 + $0x58] sm:$0xff]
    %v588 = vld [vmem:[%s62 + $0x60] sm:$0xff]
    %v589 = vld [vmem:[%s62 + $0x68] sm:$0xff]
    %v590 = vld [vmem:[%s62 + $0x70] sm:$0xff]
    %v591 = vld [vmem:[%s62 + $0x78] sm:$0xff]
    %v592 = vld [vmem:[%s62 + $0x80] sm:$0xff]
    %v593 = vld [vmem:[%s62 + $0x88] sm:$0xff]
    %v594 = vld [vmem:[%s62 + $0x90] sm:$0xff]
    %v595 = vld [vmem:[%s62 + $0x98] sm:$0xff]
    %v596 = vld [vmem:[%s62 + $0xa0] sm:$0xff]
    %v597 = vld [vmem:[%s62 + $0xa8] sm:$0xff]
    %v598 = vld [vmem:[%s62 + $0xb0] sm:$0xff]
    %v599 = vld [vmem:[%s62 + $0xb8] sm:$0xff]
    %v600 = vld [vmem:[%s62 + $0xc0] sm:$0xff]
    %v601 = vld [vmem:[%s62 + $0xc8] sm:$0xff]
    %v602 = vld [vmem:[%s62 + $0xd0] sm:$0xff]
    %v603 = vld [vmem:[%s62 + $0xd8] sm:$0xff]
    %v604 = vld [vmem:[%s62 + $0xe0] sm:$0xff]
    %v605 = vld [vmem:[%s62 + $0xe8] sm:$0xff]
    %v606 = vld [vmem:[%s62 + $0xf0] sm:$0xff]
    %v607 = vld [vmem:[%s62 + $0xf8] sm:$0xff]
    %v608 = vld [vmem:[%s62 + $0x100] sm:$0xff]
    %v609 = vld [vmem:[%s62 + $0x108] sm:$0xff]
    %v610 = vld [vmem:[%s62 + $0x110] sm:$0xff]
    %v611 = vld [vmem:[%s62 + $0x118] sm:$0xff]
    %v612 = vld [vmem:[%s62 + $0x120] sm:$0xff]
    %v613 = vld [vmem:[%s62 + $0x128] sm:$0xff]
    %v614 = vld [vmem:[%s62 + $0x130] sm:$0xff]
    %v615 = vld [vmem:[%s62 + $0x138] sm:$0xff]
    %v616 = vld [vmem:[%s62 + $0x140] sm:$0xff]
    %v617 = vld [vmem:[%s62 + $0x148] sm:$0xff]
    %v618 = vld [vmem:[%s62 + $0x150] sm:$0xff]
    %v619 = vld [vmem:[%s62 + $0x158] sm:$0xff]
    %v620 = vld [vmem:[%s62 + $0x160] sm:$0xff]
    %v621 = vld [vmem:[%s62 + $0x168] sm:$0xff]
    %v622 = vld [vmem:[%s62 + $0x170] sm:$0xff]
    %v623 = vld [vmem:[%s62 + $0x178] sm:$0xff]
    %v624 = vld [vmem:[%s62 + $0x180] sm:$0xff]
    %v625 = vld [vmem:[%s62 + $0x188] sm:$0xff]
    %v626 = vld [vmem:[%s62 + $0x190] sm:$0xff]
    %v627 = vld [vmem:[%s62 + $0x198] sm:$0xff]
    %v628 = vld [vmem:[%s62 + $0x1a0] sm:$0xff]
    %v629 = vld [vmem:[%s62 + $0x1a8] sm:$0xff]
    %v630 = vld [vmem:[%s62 + $0x1b0] sm:$0xff]
    %v631 = vld [vmem:[%s62 + $0x1b8] sm:$0xff]
    %v632 = vld [vmem:[%s62 + $0x1c0] sm:$0xff]
    %v633 = vld [vmem:[%s62 + $0x1c8] sm:$0xff]
    %v634 = vld [vmem:[%s62 + $0x1d0] sm:$0xff]
    %v635 = vld [vmem:[%s62 + $0x1d8] sm:$0xff]
    %v636 = vld [vmem:[%s62 + $0x1e0] sm:$0xff]
    %v637 = vld [vmem:[%s62 + $0x1e8] sm:$0xff]
    %v638 = vld [vmem:[%s62 + $0x1f0] sm:$0xff]
    %v639 = vld [vmem:[%s62 + $0x1f8] sm:$0xff]
    %s640 = scalar_lea.vmem [#allocation7], 3
    %v641 = vld [vmem:[%s640] ss:$8 sm:$0x3]
    %v643 = vlaneseq
    %v644 = vshrl.u32 %v643, 7
    %v645 = vsub.s32 0, %v644
    %v646 = vrot.slane %v641, %v645
    %v647 = vlaneseq
    %v648 = vshrl.u32 %v647, 7
    %v649 = vsub.s32 1, %v648
    %v650 = vrot.slane %v641, %v649
    %653 = vmatprep.subr.mxu0 %v577
    %654 = vmatpush1.msra.mxu0 %v576
    %655 = vmatprep.subr.mxu0 %v579
    %656 = vmatpush1.msra.mxu0 %v578
    %657 = vmatprep.subr.mxu0 %v581
    %658 = vmatpush1.msra.mxu0 %v580
    %659 = vmatprep.subr.mxu0 %v583
    %660 = vmatpush1.msra.mxu0 %v582
    %661 = vmatprep.subr.mxu0 %v585
    %662 = vmatpush1.msra.mxu0 %v584
    %663 = vmatprep.subr.mxu0 %v587
    %664 = vmatpush1.msra.mxu0 %v586
    %665 = vmatprep.subr.mxu0 %v589
    %666 = vmatpush1.msra.mxu0 %v588
    %667 = vmatprep.subr.mxu0 %v591
    %668 = vmatpush1.msra.mxu0 %v590
    %669 = vmatprep.subr.mxu0 %v593
    %670 = vmatpush1.msra.mxu0 %v592
    %671 = vmatprep.subr.mxu0 %v595
    %672 = vmatpush1.msra.mxu0 %v594
    %673 = vmatprep.subr.mxu0 %v597
    %674 = vmatpush1.msra.mxu0 %v596
    %675 = vmatprep.subr.mxu0 %v599
    %676 = vmatpush1.msra.mxu0 %v598
    %677 = vmatprep.subr.mxu0 %v601
    %678 = vmatpush1.msra.mxu0 %v600
    %679 = vmatprep.subr.mxu0 %v603
    %680 = vmatpush1.msra.mxu0 %v602
    %681 = vmatprep.subr.mxu0 %v605
    %682 = vmatpush1.msra.mxu0 %v604
    %683 = vmatprep.subr.mxu0 %v607
    %684 = vmatpush1.msra.mxu0 %v606
    %685 = vmatprep.subr.mxu0 %v609
    %686 = vmatpush1.msra.mxu0 %v608
    %687 = vmatprep.subr.mxu0 %v611
    %688 = vmatpush1.msra.mxu0 %v610
    %689 = vmatprep.subr.mxu0 %v613
    %690 = vmatpush1.msra.mxu0 %v612
    %691 = vmatprep.subr.mxu0 %v615
    %692 = vmatpush1.msra.mxu0 %v614
    %693 = vmatprep.subr.mxu0 %v617
    %694 = vmatpush1.msra.mxu0 %v616
    %695 = vmatprep.subr.mxu0 %v619
    %696 = vmatpush1.msra.mxu0 %v618
    %697 = vmatprep.subr.mxu0 %v621
    %698 = vmatpush1.msra.mxu0 %v620
    %699 = vmatprep.subr.mxu0 %v623
    %700 = vmatpush1.msra.mxu0 %v622
    %701 = vmatprep.subr.mxu0 %v625
    %702 = vmatpush1.msra.mxu0 %v624
    %703 = vmatprep.subr.mxu0 %v627
    %704 = vmatpush1.msra.mxu0 %v626
    %705 = vmatprep.subr.mxu0 %v629
    %706 = vmatpush1.msra.mxu0 %v628
    %707 = vmatprep.subr.mxu0 %v631
    %708 = vmatpush1.msra.mxu0 %v630
    %709 = vmatprep.subr.mxu0 %v633
    %710 = vmatpush1.msra.mxu0 %v632
    %711 = vmatprep.subr.mxu0 %v635
    %712 = vmatpush1.msra.mxu0 %v634
    %713 = vmatprep.subr.mxu0 %v637
    %714 = vmatpush1.msra.mxu0 %v636
    %715 = vmatprep.subr.mxu0 %v639
    %716 = vmatpush1.msra.mxu0 %v638
    %717 = vmatprep.mubr.f32.mxu0 %v561
    %718 = vmatmul.mubr.f32.gmra.mrb[0].mxu0 %v560
    %v719 = vpop.f32.mrb[0].mxu0
    %v720 = vadd.f32 %v646, %v719
    %v721 = vpop.f32.mrb[0].mxu0
    %v722 = vadd.f32 %v650, %v721
    %723 = vdwg.mxu0
    %v724 = vmul.f32 %v720, 0.2
    %v725 = vmul.f32 %v722, 0.2
    %v726 = vmax.f32 %v720, %v724
    %v727 = vmax.f32 %v722, %v725
    %s728 = scalar_lea.hbm %s2, 40960
    // Predicated region
    $region38: #{tpu_custom_call.1} parent=1 // pred_check
      _
    $region39: #{tpu_custom_call.1} parent=1 // pred_check_branch
      %730 = sbr.rel target = $region41
    $region40: #{tpu_custom_call.1} parent=1 // pred_region
      %731 = sst [smem:[#allocation12]] [#allocation23]
      %732 = sst [smem:[#allocation13]] [#allocation22]
    $region41: #{tpu_custom_call.1} parent=1 // pred_fallthru
      _
    %734 = shalt.err (0)
    %s736 = sshll.u32 %s62, 4
    %s737 = int_to_ptr.vmem [resolvable:$true] %s736
    %739 = dma.hbm_to_vmem [thread:$0]  %s728, 8192, %s737, %s63
    %s740 = sshll.u32 %s76, 4
    %741 = dma.done [#allocation3], %s740
    %v742 = vld [vmem:[#allocation2] sm:$0xff]
    %v743 = vld [vmem:[#allocation2 + $0x8] sm:$0xff]
    %v744 = vld [vmem:[#allocation2 + $0x10] sm:$0xff]
    %v745 = vld [vmem:[#allocation2 + $0x18] sm:$0xff]
    %v746 = vld [vmem:[#allocation2 + $0x20] sm:$0xff]
    %v747 = vld [vmem:[#allocation2 + $0x28] sm:$0xff]
    %v748 = vld [vmem:[#allocation2 + $0x30] sm:$0xff]
    %v749 = vld [vmem:[#allocation2 + $0x38] sm:$0xff]
    %v750 = vld [vmem:[#allocation2 + $0x40] sm:$0xff]
    %v751 = vld [vmem:[#allocation2 + $0x48] sm:$0xff]
    %v752 = vld [vmem:[#allocation2 + $0x50] sm:$0xff]
    %v753 = vld [vmem:[#allocation2 + $0x58] sm:$0xff]
    %v754 = vld [vmem:[#allocation2 + $0x60] sm:$0xff]
    %v755 = vld [vmem:[#allocation2 + $0x68] sm:$0xff]
    %v756 = vld [vmem:[#allocation2 + $0x70] sm:$0xff]
    %v757 = vld [vmem:[#allocation2 + $0x78] sm:$0xff]
    %v758 = vld [vmem:[#allocation2 + $0x80] sm:$0xff]
    %v759 = vld [vmem:[#allocation2 + $0x88] sm:$0xff]
    %v760 = vld [vmem:[#allocation2 + $0x90] sm:$0xff]
    %v761 = vld [vmem:[#allocation2 + $0x98] sm:$0xff]
    %v762 = vld [vmem:[#allocation2 + $0xa0] sm:$0xff]
    %v763 = vld [vmem:[#allocation2 + $0xa8] sm:$0xff]
    %v764 = vld [vmem:[#allocation2 + $0xb0] sm:$0xff]
    %v765 = vld [vmem:[#allocation2 + $0xb8] sm:$0xff]
    %v766 = vld [vmem:[#allocation2 + $0xc0] sm:$0xff]
    %v767 = vld [vmem:[#allocation2 + $0xc8] sm:$0xff]
    %v768 = vld [vmem:[#allocation2 + $0xd0] sm:$0xff]
    %v769 = vld [vmem:[#allocation2 + $0xd8] sm:$0xff]
    %v770 = vld [vmem:[#allocation2 + $0xe0] sm:$0xff]
    %v771 = vld [vmem:[#allocation2 + $0xe8] sm:$0xff]
    %v772 = vld [vmem:[#allocation2 + $0xf0] sm:$0xff]
    %v773 = vld [vmem:[#allocation2 + $0xf8] sm:$0xff]
    %v774 = vld [vmem:[#allocation2 + $0x100] sm:$0xff]
    %v775 = vld [vmem:[#allocation2 + $0x108] sm:$0xff]
    %v776 = vld [vmem:[#allocation2 + $0x110] sm:$0xff]
    %v777 = vld [vmem:[#allocation2 + $0x118] sm:$0xff]
    %v778 = vld [vmem:[#allocation2 + $0x120] sm:$0xff]
    %v779 = vld [vmem:[#allocation2 + $0x128] sm:$0xff]
    %v780 = vld [vmem:[#allocation2 + $0x130] sm:$0xff]
    %v781 = vld [vmem:[#allocation2 + $0x138] sm:$0xff]
    %v782 = vld [vmem:[#allocation2 + $0x140] sm:$0xff]
    %v783 = vld [vmem:[#allocation2 + $0x148] sm:$0xff]
    %v784 = vld [vmem:[#allocation2 + $0x150] sm:$0xff]
    %v785 = vld [vmem:[#allocation2 + $0x158] sm:$0xff]
    %v786 = vld [vmem:[#allocation2 + $0x160] sm:$0xff]
    %v787 = vld [vmem:[#allocation2 + $0x168] sm:$0xff]
    %v788 = vld [vmem:[#allocation2 + $0x170] sm:$0xff]
    %v789 = vld [vmem:[#allocation2 + $0x178] sm:$0xff]
    %v790 = vld [vmem:[#allocation2 + $0x180] sm:$0xff]
    %v791 = vld [vmem:[#allocation2 + $0x188] sm:$0xff]
    %v792 = vld [vmem:[#allocation2 + $0x190] sm:$0xff]
    %v793 = vld [vmem:[#allocation2 + $0x198] sm:$0xff]
    %v794 = vld [vmem:[#allocation2 + $0x1a0] sm:$0xff]
    %v795 = vld [vmem:[#allocation2 + $0x1a8] sm:$0xff]
    %v796 = vld [vmem:[#allocation2 + $0x1b0] sm:$0xff]
    %v797 = vld [vmem:[#allocation2 + $0x1b8] sm:$0xff]
    %v798 = vld [vmem:[#allocation2 + $0x1c0] sm:$0xff]
    %v799 = vld [vmem:[#allocation2 + $0x1c8] sm:$0xff]
    %v800 = vld [vmem:[#allocation2 + $0x1d0] sm:$0xff]
    %v801 = vld [vmem:[#allocation2 + $0x1d8] sm:$0xff]
    %v802 = vld [vmem:[#allocation2 + $0x1e0] sm:$0xff]
    %v803 = vld [vmem:[#allocation2 + $0x1e8] sm:$0xff]
    %v804 = vld [vmem:[#allocation2 + $0x1f0] sm:$0xff]
    %v805 = vld [vmem:[#allocation2 + $0x1f8] sm:$0xff]
    %s806 = scalar_lea.vmem [#allocation7], 4
    %v807 = vld [vmem:[%s806] ss:$8 sm:$0x3]
    %v809 = vlaneseq
    %v810 = vshrl.u32 %v809, 7
    %v811 = vsub.s32 0, %v810
    %v812 = vrot.slane %v807, %v811
    %v813 = vlaneseq
    %v814 = vshrl.u32 %v813, 7
    %v815 = vsub.s32 1, %v814
    %v816 = vrot.slane %v807, %v815
    %819 = vmatprep.subr.mxu0 %v743
    %820 = vmatpush1.msra.mxu0 %v742
    %821 = vmatprep.subr.mxu0 %v745
    %822 = vmatpush1.msra.mxu0 %v744
    %823 = vmatprep.subr.mxu0 %v747
    %824 = vmatpush1.msra.mxu0 %v746
    %825 = vmatprep.subr.mxu0 %v749
    %826 = vmatpush1.msra.mxu0 %v748
    %827 = vmatprep.subr.mxu0 %v751
    %828 = vmatpush1.msra.mxu0 %v750
    %829 = vmatprep.subr.mxu0 %v753
    %830 = vmatpush1.msra.mxu0 %v752
    %831 = vmatprep.subr.mxu0 %v755
    %832 = vmatpush1.msra.mxu0 %v754
    %833 = vmatprep.subr.mxu0 %v757
    %834 = vmatpush1.msra.mxu0 %v756
    %835 = vmatprep.subr.mxu0 %v759
    %836 = vmatpush1.msra.mxu0 %v758
    %837 = vmatprep.subr.mxu0 %v761
    %838 = vmatpush1.msra.mxu0 %v760
    %839 = vmatprep.subr.mxu0 %v763
    %840 = vmatpush1.msra.mxu0 %v762
    %841 = vmatprep.subr.mxu0 %v765
    %842 = vmatpush1.msra.mxu0 %v764
    %843 = vmatprep.subr.mxu0 %v767
    %844 = vmatpush1.msra.mxu0 %v766
    %845 = vmatprep.subr.mxu0 %v769
    %846 = vmatpush1.msra.mxu0 %v768
    %847 = vmatprep.subr.mxu0 %v771
    %848 = vmatpush1.msra.mxu0 %v770
    %849 = vmatprep.subr.mxu0 %v773
    %850 = vmatpush1.msra.mxu0 %v772
    %851 = vmatprep.subr.mxu0 %v775
    %852 = vmatpush1.msra.mxu0 %v774
    %853 = vmatprep.subr.mxu0 %v777
    %854 = vmatpush1.msra.mxu0 %v776
    %855 = vmatprep.subr.mxu0 %v779
    %856 = vmatpush1.msra.mxu0 %v778
    %857 = vmatprep.subr.mxu0 %v781
    %858 = vmatpush1.msra.mxu0 %v780
    %859 = vmatprep.subr.mxu0 %v783
    %860 = vmatpush1.msra.mxu0 %v782
    %861 = vmatprep.subr.mxu0 %v785
    %862 = vmatpush1.msra.mxu0 %v784
    %863 = vmatprep.subr.mxu0 %v787
    %864 = vmatpush1.msra.mxu0 %v786
    %865 = vmatprep.subr.mxu0 %v789
    %866 = vmatpush1.msra.mxu0 %v788
    %867 = vmatprep.subr.mxu0 %v791
    %868 = vmatpush1.msra.mxu0 %v790
    %869 = vmatprep.subr.mxu0 %v793
    %870 = vmatpush1.msra.mxu0 %v792
    %871 = vmatprep.subr.mxu0 %v795
    %872 = vmatpush1.msra.mxu0 %v794
    %873 = vmatprep.subr.mxu0 %v797
    %874 = vmatpush1.msra.mxu0 %v796
    %875 = vmatprep.subr.mxu0 %v799
    %876 = vmatpush1.msra.mxu0 %v798
    %877 = vmatprep.subr.mxu0 %v801
    %878 = vmatpush1.msra.mxu0 %v800
    %879 = vmatprep.subr.mxu0 %v803
    %880 = vmatpush1.msra.mxu0 %v802
    %881 = vmatprep.subr.mxu0 %v805
    %882 = vmatpush1.msra.mxu0 %v804
    %883 = vmatprep.mubr.f32.mxu0 %v727
    %884 = vmatmul.mubr.f32.gmra.mrb[0].mxu0 %v726
    %v885 = vpop.f32.mrb[0].mxu0
    %v886 = vadd.f32 %v812, %v885
    %v887 = vpop.f32.mrb[0].mxu0
    %v888 = vadd.f32 %v816, %v887
    %889 = vdwg.mxu0
    %v890 = vmul.f32 %v886, 0.2
    %v891 = vmul.f32 %v888, 0.2
    %v892 = vmax.f32 %v886, %v890
    %v893 = vmax.f32 %v888, %v891
    %s894 = scalar_lea.hbm %s2, 49152
    // Predicated region
    $region42: #{tpu_custom_call.1} parent=1 // pred_check
      _
    $region43: #{tpu_custom_call.1} parent=1 // pred_check_branch
      %896 = sbr.rel target = $region45
    $region44: #{tpu_custom_call.1} parent=1 // pred_region
      %897 = sst [smem:[#allocation12]] [#allocation25]
      %898 = sst [smem:[#allocation13]] [#allocation24]
    $region45: #{tpu_custom_call.1} parent=1 // pred_fallthru
      _
    %900 = shalt.err (0)
    %s902 = sshll.u32 [#allocation2], 4
    %s903 = int_to_ptr.vmem [resolvable:$true] %s902
    %905 = dma.hbm_to_vmem [thread:$0]  %s894, 8192, %s903, [#allocation3]
    %s906 = sshll.u32 %s76, 4
    %907 = dma.done %s63, %s906
    %v908 = vld [vmem:[%s62] sm:$0xff]
    %v909 = vld [vmem:[%s62 + $0x8] sm:$0xff]
    %v910 = vld [vmem:[%s62 + $0x10] sm:$0xff]
    %v911 = vld [vmem:[%s62 + $0x18] sm:$0xff]
    %v912 = vld [vmem:[%s62 + $0x20] sm:$0xff]
    %v913 = vld [vmem:[%s62 + $0x28] sm:$0xff]
    %v914 = vld [vmem:[%s62 + $0x30] sm:$0xff]
    %v915 = vld [vmem:[%s62 + $0x38] sm:$0xff]
    %v916 = vld [vmem:[%s62 + $0x40] sm:$0xff]
    %v917 = vld [vmem:[%s62 + $0x48] sm:$0xff]
    %v918 = vld [vmem:[%s62 + $0x50] sm:$0xff]
    %v919 = vld [vmem:[%s62 + $0x58] sm:$0xff]
    %v920 = vld [vmem:[%s62 + $0x60] sm:$0xff]
    %v921 = vld [vmem:[%s62 + $0x68] sm:$0xff]
    %v922 = vld [vmem:[%s62 + $0x70] sm:$0xff]
    %v923 = vld [vmem:[%s62 + $0x78] sm:$0xff]
    %v924 = vld [vmem:[%s62 + $0x80] sm:$0xff]
    %v925 = vld [vmem:[%s62 + $0x88] sm:$0xff]
    %v926 = vld [vmem:[%s62 + $0x90] sm:$0xff]
    %v927 = vld [vmem:[%s62 + $0x98] sm:$0xff]
    %v928 = vld [vmem:[%s62 + $0xa0] sm:$0xff]
    %v929 = vld [vmem:[%s62 + $0xa8] sm:$0xff]
    %v930 = vld [vmem:[%s62 + $0xb0] sm:$0xff]
    %v931 = vld [vmem:[%s62 + $0xb8] sm:$0xff]
    %v932 = vld [vmem:[%s62 + $0xc0] sm:$0xff]
    %v933 = vld [vmem:[%s62 + $0xc8] sm:$0xff]
    %v934 = vld [vmem:[%s62 + $0xd0] sm:$0xff]
    %v935 = vld [vmem:[%s62 + $0xd8] sm:$0xff]
    %v936 = vld [vmem:[%s62 + $0xe0] sm:$0xff]
    %v937 = vld [vmem:[%s62 + $0xe8] sm:$0xff]
    %v938 = vld [vmem:[%s62 + $0xf0] sm:$0xff]
    %v939 = vld [vmem:[%s62 + $0xf8] sm:$0xff]
    %v940 = vld [vmem:[%s62 + $0x100] sm:$0xff]
    %v941 = vld [vmem:[%s62 + $0x108] sm:$0xff]
    %v942 = vld [vmem:[%s62 + $0x110] sm:$0xff]
    %v943 = vld [vmem:[%s62 + $0x118] sm:$0xff]
    %v944 = vld [vmem:[%s62 + $0x120] sm:$0xff]
    %v945 = vld [vmem:[%s62 + $0x128] sm:$0xff]
    %v946 = vld [vmem:[%s62 + $0x130] sm:$0xff]
    %v947 = vld [vmem:[%s62 + $0x138] sm:$0xff]
    %v948 = vld [vmem:[%s62 + $0x140] sm:$0xff]
    %v949 = vld [vmem:[%s62 + $0x148] sm:$0xff]
    %v950 = vld [vmem:[%s62 + $0x150] sm:$0xff]
    %v951 = vld [vmem:[%s62 + $0x158] sm:$0xff]
    %v952 = vld [vmem:[%s62 + $0x160] sm:$0xff]
    %v953 = vld [vmem:[%s62 + $0x168] sm:$0xff]
    %v954 = vld [vmem:[%s62 + $0x170] sm:$0xff]
    %v955 = vld [vmem:[%s62 + $0x178] sm:$0xff]
    %v956 = vld [vmem:[%s62 + $0x180] sm:$0xff]
    %v957 = vld [vmem:[%s62 + $0x188] sm:$0xff]
    %v958 = vld [vmem:[%s62 + $0x190] sm:$0xff]
    %v959 = vld [vmem:[%s62 + $0x198] sm:$0xff]
    %v960 = vld [vmem:[%s62 + $0x1a0] sm:$0xff]
    %v961 = vld [vmem:[%s62 + $0x1a8] sm:$0xff]
    %v962 = vld [vmem:[%s62 + $0x1b0] sm:$0xff]
    %v963 = vld [vmem:[%s62 + $0x1b8] sm:$0xff]
    %v964 = vld [vmem:[%s62 + $0x1c0] sm:$0xff]
    %v965 = vld [vmem:[%s62 + $0x1c8] sm:$0xff]
    %v966 = vld [vmem:[%s62 + $0x1d0] sm:$0xff]
    %v967 = vld [vmem:[%s62 + $0x1d8] sm:$0xff]
    %v968 = vld [vmem:[%s62 + $0x1e0] sm:$0xff]
    %v969 = vld [vmem:[%s62 + $0x1e8] sm:$0xff]
    %v970 = vld [vmem:[%s62 + $0x1f0] sm:$0xff]
    %v971 = vld [vmem:[%s62 + $0x1f8] sm:$0xff]
    %s972 = scalar_lea.vmem [#allocation7], 5
    %v973 = vld [vmem:[%s972] ss:$8 sm:$0x3]
    %v975 = vlaneseq
    %v976 = vshrl.u32 %v975, 7
    %v977 = vsub.s32 0, %v976
    %v978 = vrot.slane %v973, %v977
    %v979 = vlaneseq
    %v980 = vshrl.u32 %v979, 7
    %v981 = vsub.s32 1, %v980
    %v982 = vrot.slane %v973, %v981
    %985 = vmatprep.subr.mxu0 %v909
    %986 = vmatpush1.msra.mxu0 %v908
    %987 = vmatprep.subr.mxu0 %v911
    %988 = vmatpush1.msra.mxu0 %v910
    %989 = vmatprep.subr.mxu0 %v913
    %990 = vmatpush1.msra.mxu0 %v912
    %991 = vmatprep.subr.mxu0 %v915
    %992 = vmatpush1.msra.mxu0 %v914
    %993 = vmatprep.subr.mxu0 %v917
    %994 = vmatpush1.msra.mxu0 %v916
    %995 = vmatprep.subr.mxu0 %v919
    %996 = vmatpush1.msra.mxu0 %v918
    %997 = vmatprep.subr.mxu0 %v921
    %998 = vmatpush1.msra.mxu0 %v920
    %999 = vmatprep.subr.mxu0 %v923
    %1000 = vmatpush1.msra.mxu0 %v922
    %1001 = vmatprep.subr.mxu0 %v925
    %1002 = vmatpush1.msra.mxu0 %v924
    %1003 = vmatprep.subr.mxu0 %v927
    %1004 = vmatpush1.msra.mxu0 %v926
    %1005 = vmatprep.subr.mxu0 %v929
    %1006 = vmatpush1.msra.mxu0 %v928
    %1007 = vmatprep.subr.mxu0 %v931
    %1008 = vmatpush1.msra.mxu0 %v930
    %1009 = vmatprep.subr.mxu0 %v933
    %1010 = vmatpush1.msra.mxu0 %v932
    %1011 = vmatprep.subr.mxu0 %v935
    %1012 = vmatpush1.msra.mxu0 %v934
    %1013 = vmatprep.subr.mxu0 %v937
    %1014 = vmatpush1.msra.mxu0 %v936
    %1015 = vmatprep.subr.mxu0 %v939
    %1016 = vmatpush1.msra.mxu0 %v938
    %1017 = vmatprep.subr.mxu0 %v941
    %1018 = vmatpush1.msra.mxu0 %v940
    %1019 = vmatprep.subr.mxu0 %v943
    %1020 = vmatpush1.msra.mxu0 %v942
    %1021 = vmatprep.subr.mxu0 %v945
    %1022 = vmatpush1.msra.mxu0 %v944
    %1023 = vmatprep.subr.mxu0 %v947
    %1024 = vmatpush1.msra.mxu0 %v946
    %1025 = vmatprep.subr.mxu0 %v949
    %1026 = vmatpush1.msra.mxu0 %v948
    %1027 = vmatprep.subr.mxu0 %v951
    %1028 = vmatpush1.msra.mxu0 %v950
    %1029 = vmatprep.subr.mxu0 %v953
    %1030 = vmatpush1.msra.mxu0 %v952
    %1031 = vmatprep.subr.mxu0 %v955
    %1032 = vmatpush1.msra.mxu0 %v954
    %1033 = vmatprep.subr.mxu0 %v957
    %1034 = vmatpush1.msra.mxu0 %v956
    %1035 = vmatprep.subr.mxu0 %v959
    %1036 = vmatpush1.msra.mxu0 %v958
    %1037 = vmatprep.subr.mxu0 %v961
    %1038 = vmatpush1.msra.mxu0 %v960
    %1039 = vmatprep.subr.mxu0 %v963
    %1040 = vmatpush1.msra.mxu0 %v962
    %1041 = vmatprep.subr.mxu0 %v965
    %1042 = vmatpush1.msra.mxu0 %v964
    %1043 = vmatprep.subr.mxu0 %v967
    %1044 = vmatpush1.msra.mxu0 %v966
    %1045 = vmatprep.subr.mxu0 %v969
    %1046 = vmatpush1.msra.mxu0 %v968
    %1047 = vmatprep.subr.mxu0 %v971
    %1048 = vmatpush1.msra.mxu0 %v970
    %1049 = vmatprep.mubr.f32.mxu0 %v893
    %1050 = vmatmul.mubr.f32.gmra.mrb[0].mxu0 %v892
    %v1051 = vpop.f32.mrb[0].mxu0
    %v1052 = vadd.f32 %v978, %v1051
    %v1053 = vpop.f32.mrb[0].mxu0
    %v1054 = vadd.f32 %v982, %v1053
    %1055 = vdwg.mxu0
    %v1056 = vmul.f32 %v1052, 0.2
    %v1057 = vmul.f32 %v1054, 0.2
    %v1058 = vmax.f32 %v1052, %v1056
    %v1059 = vmax.f32 %v1054, %v1057
    %s1060 = scalar_lea.hbm %s2, 57344
    // Predicated region
    $region46: #{tpu_custom_call.1} parent=1 // pred_check
      _
    $region47: #{tpu_custom_call.1} parent=1 // pred_check_branch
      %1062 = sbr.rel target = $region49
    $region48: #{tpu_custom_call.1} parent=1 // pred_region
      %1063 = sst [smem:[#allocation12]] [#allocation27]
      %1064 = sst [smem:[#allocation13]] [#allocation26]
    $region49: #{tpu_custom_call.1} parent=1 // pred_fallthru
      _
    %1066 = shalt.err (0)
    %s1068 = sshll.u32 %s62, 4
    %s1069 = int_to_ptr.vmem [resolvable:$true] %s1068
    %1071 = dma.hbm_to_vmem [thread:$0]  %s1060, 8192, %s1069, %s63
    %s1072 = sshll.u32 %s76, 4
    %1073 = dma.done [#allocation3], %s1072
    %v1074 = vld [vmem:[#allocation2] sm:$0xff]
    %v1075 = vld [vmem:[#allocation2 + $0x8] sm:$0xff]
    %v1076 = vld [vmem:[#allocation2 + $0x10] sm:$0xff]
    %v1077 = vld [vmem:[#allocation2 + $0x18] sm:$0xff]
    %v1078 = vld [vmem:[#allocation2 + $0x20] sm:$0xff]
    %v1079 = vld [vmem:[#allocation2 + $0x28] sm:$0xff]
    %v1080 = vld [vmem:[#allocation2 + $0x30] sm:$0xff]
    %v1081 = vld [vmem:[#allocation2 + $0x38] sm:$0xff]
    %v1082 = vld [vmem:[#allocation2 + $0x40] sm:$0xff]
    %v1083 = vld [vmem:[#allocation2 + $0x48] sm:$0xff]
    %v1084 = vld [vmem:[#allocation2 + $0x50] sm:$0xff]
    %v1085 = vld [vmem:[#allocation2 + $0x58] sm:$0xff]
    %v1086 = vld [vmem:[#allocation2 + $0x60] sm:$0xff]
    %v1087 = vld [vmem:[#allocation2 + $0x68] sm:$0xff]
    %v1088 = vld [vmem:[#allocation2 + $0x70] sm:$0xff]
    %v1089 = vld [vmem:[#allocation2 + $0x78] sm:$0xff]
    %v1090 = vld [vmem:[#allocation2 + $0x80] sm:$0xff]
    %v1091 = vld [vmem:[#allocation2 + $0x88] sm:$0xff]
    %v1092 = vld [vmem:[#allocation2 + $0x90] sm:$0xff]
    %v1093 = vld [vmem:[#allocation2 + $0x98] sm:$0xff]
    %v1094 = vld [vmem:[#allocation2 + $0xa0] sm:$0xff]
    %v1095 = vld [vmem:[#allocation2 + $0xa8] sm:$0xff]
    %v1096 = vld [vmem:[#allocation2 + $0xb0] sm:$0xff]
    %v1097 = vld [vmem:[#allocation2 + $0xb8] sm:$0xff]
    %v1098 = vld [vmem:[#allocation2 + $0xc0] sm:$0xff]
    %v1099 = vld [vmem:[#allocation2 + $0xc8] sm:$0xff]
    %v1100 = vld [vmem:[#allocation2 + $0xd0] sm:$0xff]
    %v1101 = vld [vmem:[#allocation2 + $0xd8] sm:$0xff]
    %v1102 = vld [vmem:[#allocation2 + $0xe0] sm:$0xff]
    %v1103 = vld [vmem:[#allocation2 + $0xe8] sm:$0xff]
    %v1104 = vld [vmem:[#allocation2 + $0xf0] sm:$0xff]
    %v1105 = vld [vmem:[#allocation2 + $0xf8] sm:$0xff]
    %v1106 = vld [vmem:[#allocation2 + $0x100] sm:$0xff]
    %v1107 = vld [vmem:[#allocation2 + $0x108] sm:$0xff]
    %v1108 = vld [vmem:[#allocation2 + $0x110] sm:$0xff]
    %v1109 = vld [vmem:[#allocation2 + $0x118] sm:$0xff]
    %v1110 = vld [vmem:[#allocation2 + $0x120] sm:$0xff]
    %v1111 = vld [vmem:[#allocation2 + $0x128] sm:$0xff]
    %v1112 = vld [vmem:[#allocation2 + $0x130] sm:$0xff]
    %v1113 = vld [vmem:[#allocation2 + $0x138] sm:$0xff]
    %v1114 = vld [vmem:[#allocation2 + $0x140] sm:$0xff]
    %v1115 = vld [vmem:[#allocation2 + $0x148] sm:$0xff]
    %v1116 = vld [vmem:[#allocation2 + $0x150] sm:$0xff]
    %v1117 = vld [vmem:[#allocation2 + $0x158] sm:$0xff]
    %v1118 = vld [vmem:[#allocation2 + $0x160] sm:$0xff]
    %v1119 = vld [vmem:[#allocation2 + $0x168] sm:$0xff]
    %v1120 = vld [vmem:[#allocation2 + $0x170] sm:$0xff]
    %v1121 = vld [vmem:[#allocation2 + $0x178] sm:$0xff]
    %v1122 = vld [vmem:[#allocation2 + $0x180] sm:$0xff]
    %v1123 = vld [vmem:[#allocation2 + $0x188] sm:$0xff]
    %v1124 = vld [vmem:[#allocation2 + $0x190] sm:$0xff]
    %v1125 = vld [vmem:[#allocation2 + $0x198] sm:$0xff]
    %v1126 = vld [vmem:[#allocation2 + $0x1a0] sm:$0xff]
    %v1127 = vld [vmem:[#allocation2 + $0x1a8] sm:$0xff]
    %v1128 = vld [vmem:[#allocation2 + $0x1b0] sm:$0xff]
    %v1129 = vld [vmem:[#allocation2 + $0x1b8] sm:$0xff]
    %v1130 = vld [vmem:[#allocation2 + $0x1c0] sm:$0xff]
    %v1131 = vld [vmem:[#allocation2 + $0x1c8] sm:$0xff]
    %v1132 = vld [vmem:[#allocation2 + $0x1d0] sm:$0xff]
    %v1133 = vld [vmem:[#allocation2 + $0x1d8] sm:$0xff]
    %v1134 = vld [vmem:[#allocation2 + $0x1e0] sm:$0xff]
    %v1135 = vld [vmem:[#allocation2 + $0x1e8] sm:$0xff]
    %v1136 = vld [vmem:[#allocation2 + $0x1f0] sm:$0xff]
    %v1137 = vld [vmem:[#allocation2 + $0x1f8] sm:$0xff]
    %s1138 = scalar_lea.vmem [#allocation7], 6
    %v1139 = vld [vmem:[%s1138] ss:$8 sm:$0x3]
    %v1141 = vlaneseq
    %v1142 = vshrl.u32 %v1141, 7
    %v1143 = vsub.s32 0, %v1142
    %v1144 = vrot.slane %v1139, %v1143
    %v1145 = vlaneseq
    %v1146 = vshrl.u32 %v1145, 7
    %v1147 = vsub.s32 1, %v1146
    %v1148 = vrot.slane %v1139, %v1147
    %1151 = vmatprep.subr.mxu0 %v1075
    %1152 = vmatpush1.msra.mxu0 %v1074
    %1153 = vmatprep.subr.mxu0 %v1077
    %1154 = vmatpush1.msra.mxu0 %v1076
    %1155 = vmatprep.subr.mxu0 %v1079
    %1156 = vmatpush1.msra.mxu0 %v1078
    %1157 = vmatprep.subr.mxu0 %v1081
    %1158 = vmatpush1.msra.mxu0 %v1080
    %1159 = vmatprep.subr.mxu0 %v1083
    %1160 = vmatpush1.msra.mxu0 %v1082
    %1161 = vmatprep.subr.mxu0 %v1085
    %1162 = vmatpush1.msra.mxu0 %v1084
    %1163 = vmatprep.subr.mxu0 %v1087
    %1164 = vmatpush1.msra.mxu0 %v1086
    %1165 = vmatprep.subr.mxu0 %v1089
    %1166 = vmatpush1.msra.mxu0 %v1088
    %1167 = vmatprep.subr.mxu0 %v1091
    %1168 = vmatpush1.msra.mxu0 %v1090
    %1169 = vmatprep.subr.mxu0 %v1093
    %1170 = vmatpush1.msra.mxu0 %v1092
    %1171 = vmatprep.subr.mxu0 %v1095
    %1172 = vmatpush1.msra.mxu0 %v1094
    %1173 = vmatprep.subr.mxu0 %v1097
    %1174 = vmatpush1.msra.mxu0 %v1096
    %1175 = vmatprep.subr.mxu0 %v1099
    %1176 = vmatpush1.msra.mxu0 %v1098
    %1177 = vmatprep.subr.mxu0 %v1101
    %1178 = vmatpush1.msra.mxu0 %v1100
    %1179 = vmatprep.subr.mxu0 %v1103
    %1180 = vmatpush1.msra.mxu0 %v1102
    %1181 = vmatprep.subr.mxu0 %v1105
    %1182 = vmatpush1.msra.mxu0 %v1104
    %1183 = vmatprep.subr.mxu0 %v1107
    %1184 = vmatpush1.msra.mxu0 %v1106
    %1185 = vmatprep.subr.mxu0 %v1109
    %1186 = vmatpush1.msra.mxu0 %v1108
    %1187 = vmatprep.subr.mxu0 %v1111
    %1188 = vmatpush1.msra.mxu0 %v1110
    %1189 = vmatprep.subr.mxu0 %v1113
    %1190 = vmatpush1.msra.mxu0 %v1112
    %1191 = vmatprep.subr.mxu0 %v1115
    %1192 = vmatpush1.msra.mxu0 %v1114
    %1193 = vmatprep.subr.mxu0 %v1117
    %1194 = vmatpush1.msra.mxu0 %v1116
    %1195 = vmatprep.subr.mxu0 %v1119
    %1196 = vmatpush1.msra.mxu0 %v1118
    %1197 = vmatprep.subr.mxu0 %v1121
    %1198 = vmatpush1.msra.mxu0 %v1120
    %1199 = vmatprep.subr.mxu0 %v1123
    %1200 = vmatpush1.msra.mxu0 %v1122
    %1201 = vmatprep.subr.mxu0 %v1125
    %1202 = vmatpush1.msra.mxu0 %v1124
    %1203 = vmatprep.subr.mxu0 %v1127
    %1204 = vmatpush1.msra.mxu0 %v1126
    %1205 = vmatprep.subr.mxu0 %v1129
    %1206 = vmatpush1.msra.mxu0 %v1128
    %1207 = vmatprep.subr.mxu0 %v1131
    %1208 = vmatpush1.msra.mxu0 %v1130
    %1209 = vmatprep.subr.mxu0 %v1133
    %1210 = vmatpush1.msra.mxu0 %v1132
    %1211 = vmatprep.subr.mxu0 %v1135
    %1212 = vmatpush1.msra.mxu0 %v1134
    %1213 = vmatprep.subr.mxu0 %v1137
    %1214 = vmatpush1.msra.mxu0 %v1136
    %1215 = vmatprep.mubr.f32.mxu0 %v1059
    %1216 = vmatmul.mubr.f32.gmra.mrb[0].mxu0 %v1058
    %v1217 = vpop.f32.mrb[0].mxu0
    %v1218 = vadd.f32 %v1144, %v1217
    %v1219 = vpop.f32.mrb[0].mxu0
    %v1220 = vadd.f32 %v1148, %v1219
    %1221 = vdwg.mxu0
    %v1222 = vmul.f32 %v1218, 0.2
    %v1223 = vmul.f32 %v1220, 0.2
    %v1224 = vmax.f32 %v1218, %v1222
    %v1225 = vmax.f32 %v1220, %v1223
    %s1226 = sshll.u32 %s76, 4
    %1227 = dma.done %s63, %s1226
    %v1228 = vld [vmem:[%s62] sm:$0xff]
    %v1229 = vld [vmem:[%s62 + $0x8] sm:$0xff]
    %v1230 = vld [vmem:[%s62 + $0x10] sm:$0xff]
    %v1231 = vld [vmem:[%s62 + $0x18] sm:$0xff]
    %v1232 = vld [vmem:[%s62 + $0x20] sm:$0xff]
    %v1233 = vld [vmem:[%s62 + $0x28] sm:$0xff]
    %v1234 = vld [vmem:[%s62 + $0x30] sm:$0xff]
    %v1235 = vld [vmem:[%s62 + $0x38] sm:$0xff]
    %v1236 = vld [vmem:[%s62 + $0x40] sm:$0xff]
    %v1237 = vld [vmem:[%s62 + $0x48] sm:$0xff]
    %v1238 = vld [vmem:[%s62 + $0x50] sm:$0xff]
    %v1239 = vld [vmem:[%s62 + $0x58] sm:$0xff]
    %v1240 = vld [vmem:[%s62 + $0x60] sm:$0xff]
    %v1241 = vld [vmem:[%s62 + $0x68] sm:$0xff]
    %v1242 = vld [vmem:[%s62 + $0x70] sm:$0xff]
    %v1243 = vld [vmem:[%s62 + $0x78] sm:$0xff]
    %v1244 = vld [vmem:[%s62 + $0x80] sm:$0xff]
    %v1245 = vld [vmem:[%s62 + $0x88] sm:$0xff]
    %v1246 = vld [vmem:[%s62 + $0x90] sm:$0xff]
    %v1247 = vld [vmem:[%s62 + $0x98] sm:$0xff]
    %v1248 = vld [vmem:[%s62 + $0xa0] sm:$0xff]
    %v1249 = vld [vmem:[%s62 + $0xa8] sm:$0xff]
    %v1250 = vld [vmem:[%s62 + $0xb0] sm:$0xff]
    %v1251 = vld [vmem:[%s62 + $0xb8] sm:$0xff]
    %v1252 = vld [vmem:[%s62 + $0xc0] sm:$0xff]
    %v1253 = vld [vmem:[%s62 + $0xc8] sm:$0xff]
    %v1254 = vld [vmem:[%s62 + $0xd0] sm:$0xff]
    %v1255 = vld [vmem:[%s62 + $0xd8] sm:$0xff]
    %v1256 = vld [vmem:[%s62 + $0xe0] sm:$0xff]
    %v1257 = vld [vmem:[%s62 + $0xe8] sm:$0xff]
    %v1258 = vld [vmem:[%s62 + $0xf0] sm:$0xff]
    %v1259 = vld [vmem:[%s62 + $0xf8] sm:$0xff]
    %v1260 = vld [vmem:[%s62 + $0x100] sm:$0xff]
    %v1261 = vld [vmem:[%s62 + $0x108] sm:$0xff]
    %v1262 = vld [vmem:[%s62 + $0x110] sm:$0xff]
    %v1263 = vld [vmem:[%s62 + $0x118] sm:$0xff]
    %v1264 = vld [vmem:[%s62 + $0x120] sm:$0xff]
    %v1265 = vld [vmem:[%s62 + $0x128] sm:$0xff]
    %v1266 = vld [vmem:[%s62 + $0x130] sm:$0xff]
    %v1267 = vld [vmem:[%s62 + $0x138] sm:$0xff]
    %v1268 = vld [vmem:[%s62 + $0x140] sm:$0xff]
    %v1269 = vld [vmem:[%s62 + $0x148] sm:$0xff]
    %v1270 = vld [vmem:[%s62 + $0x150] sm:$0xff]
    %v1271 = vld [vmem:[%s62 + $0x158] sm:$0xff]
    %v1272 = vld [vmem:[%s62 + $0x160] sm:$0xff]
    %v1273 = vld [vmem:[%s62 + $0x168] sm:$0xff]
    %v1274 = vld [vmem:[%s62 + $0x170] sm:$0xff]
    %v1275 = vld [vmem:[%s62 + $0x178] sm:$0xff]
    %v1276 = vld [vmem:[%s62 + $0x180] sm:$0xff]
    %v1277 = vld [vmem:[%s62 + $0x188] sm:$0xff]
    %v1278 = vld [vmem:[%s62 + $0x190] sm:$0xff]
    %v1279 = vld [vmem:[%s62 + $0x198] sm:$0xff]
    %v1280 = vld [vmem:[%s62 + $0x1a0] sm:$0xff]
    %v1281 = vld [vmem:[%s62 + $0x1a8] sm:$0xff]
    %v1282 = vld [vmem:[%s62 + $0x1b0] sm:$0xff]
    %v1283 = vld [vmem:[%s62 + $0x1b8] sm:$0xff]
    %v1284 = vld [vmem:[%s62 + $0x1c0] sm:$0xff]
    %v1285 = vld [vmem:[%s62 + $0x1c8] sm:$0xff]
    %v1286 = vld [vmem:[%s62 + $0x1d0] sm:$0xff]
    %v1287 = vld [vmem:[%s62 + $0x1d8] sm:$0xff]
    %v1288 = vld [vmem:[%s62 + $0x1e0] sm:$0xff]
    %v1289 = vld [vmem:[%s62 + $0x1e8] sm:$0xff]
    %v1290 = vld [vmem:[%s62 + $0x1f0] sm:$0xff]
    %v1291 = vld [vmem:[%s62 + $0x1f8] sm:$0xff]
    %s1292 = scalar_lea.vmem [#allocation7], 7
    %v1293 = vld [vmem:[%s1292] ss:$8 sm:$0x3]
    %v1295 = vlaneseq
    %v1296 = vshrl.u32 %v1295, 7
    %v1297 = vsub.s32 0, %v1296
    %v1298 = vrot.slane %v1293, %v1297
    %v1299 = vlaneseq
    %v1300 = vshrl.u32 %v1299, 7
    %v1301 = vsub.s32 1, %v1300
    %v1302 = vrot.slane %v1293, %v1301
    %1305 = vmatprep.subr.mxu0 %v1229
    %1306 = vmatpush1.msra.mxu0 %v1228
    %1307 = vmatprep.subr.mxu0 %v1231
    %1308 = vmatpush1.msra.mxu0 %v1230
    %1309 = vmatprep.subr.mxu0 %v1233
    %1310 = vmatpush1.msra.mxu0 %v1232
    %1311 = vmatprep.subr.mxu0 %v1235
    %1312 = vmatpush1.msra.mxu0 %v1234
    %1313 = vmatprep.subr.mxu0 %v1237
    %1314 = vmatpush1.msra.mxu0 %v1236
    %1315 = vmatprep.subr.mxu0 %v1239
    %1316 = vmatpush1.msra.mxu0 %v1238
    %1317 = vmatprep.subr.mxu0 %v1241
    %1318 = vmatpush1.msra.mxu0 %v1240
    %1319 = vmatprep.subr.mxu0 %v1243
    %1320 = vmatpush1.msra.mxu0 %v1242
    %1321 = vmatprep.subr.mxu0 %v1245
    %1322 = vmatpush1.msra.mxu0 %v1244
    %1323 = vmatprep.subr.mxu0 %v1247
    %1324 = vmatpush1.msra.mxu0 %v1246
    %1325 = vmatprep.subr.mxu0 %v1249
    %1326 = vmatpush1.msra.mxu0 %v1248
    %1327 = vmatprep.subr.mxu0 %v1251
    %1328 = vmatpush1.msra.mxu0 %v1250
    %1329 = vmatprep.subr.mxu0 %v1253
    %1330 = vmatpush1.msra.mxu0 %v1252
    %1331 = vmatprep.subr.mxu0 %v1255
    %1332 = vmatpush1.msra.mxu0 %v1254
    %1333 = vmatprep.subr.mxu0 %v1257
    %1334 = vmatpush1.msra.mxu0 %v1256
    %1335 = vmatprep.subr.mxu0 %v1259
    %1336 = vmatpush1.msra.mxu0 %v1258
    %1337 = vmatprep.subr.mxu0 %v1261
    %1338 = vmatpush1.msra.mxu0 %v1260
    %1339 = vmatprep.subr.mxu0 %v1263
    %1340 = vmatpush1.msra.mxu0 %v1262
    %1341 = vmatprep.subr.mxu0 %v1265
    %1342 = vmatpush1.msra.mxu0 %v1264
    %1343 = vmatprep.subr.mxu0 %v1267
    %1344 = vmatpush1.msra.mxu0 %v1266
    %1345 = vmatprep.subr.mxu0 %v1269
    %1346 = vmatpush1.msra.mxu0 %v1268
    %1347 = vmatprep.subr.mxu0 %v1271
    %1348 = vmatpush1.msra.mxu0 %v1270
    %1349 = vmatprep.subr.mxu0 %v1273
    %1350 = vmatpush1.msra.mxu0 %v1272
    %1351 = vmatprep.subr.mxu0 %v1275
    %1352 = vmatpush1.msra.mxu0 %v1274
    %1353 = vmatprep.subr.mxu0 %v1277
    %1354 = vmatpush1.msra.mxu0 %v1276
    %1355 = vmatprep.subr.mxu0 %v1279
    %1356 = vmatpush1.msra.mxu0 %v1278
    %1357 = vmatprep.subr.mxu0 %v1281
    %1358 = vmatpush1.msra.mxu0 %v1280
    %1359 = vmatprep.subr.mxu0 %v1283
    %1360 = vmatpush1.msra.mxu0 %v1282
    %1361 = vmatprep.subr.mxu0 %v1285
    %1362 = vmatpush1.msra.mxu0 %v1284
    %1363 = vmatprep.subr.mxu0 %v1287
    %1364 = vmatpush1.msra.mxu0 %v1286
    %1365 = vmatprep.subr.mxu0 %v1289
    %1366 = vmatpush1.msra.mxu0 %v1288
    %1367 = vmatprep.subr.mxu0 %v1291
    %1368 = vmatpush1.msra.mxu0 %v1290
    %1369 = vmatprep.mubr.f32.mxu0 %v1225
    %1370 = vmatmul.mubr.f32.gmra.mrb[0].mxu0 %v1224
    %v1371 = vpop.f32.mrb[0].mxu0
    %v1372 = vadd.f32 %v1298, %v1371
    %v1373 = vpop.f32.mrb[0].mxu0
    %v1374 = vadd.f32 %v1302, %v1373
    %1375 = vdwg.mxu0
    %v1376 = vmul.f32 %v1372, 0.2
    %v1377 = vmul.f32 %v1374, 0.2
    %v1378 = vmax.f32 %v1372, %v1376
    %v1379 = vmax.f32 %v1374, %v1377
    %1380 = vst [vmem:[#allocation9] sm:$0xff] %v1378
    %1381 = vst [vmem:[#allocation9 + $0x8] sm:$0xff] %v1379
    // Predicated region
    $region50: #{tpu_custom_call.1} parent=1 // pred_check
      _
    $region51: #{tpu_custom_call.1} parent=1 // pred_check_branch
      %1383 = sbr.rel (0) target = $region53
    $region52: #{tpu_custom_call.1} parent=1 // pred_region
      %s1385 = ssub.s32 256, 256
      %1386 = vsyncadd [#allocation6], %s1385
      %s1388 = sshll.u32 [#allocation9], 4
      %s1389 = int_to_ptr.vmem [resolvable:$true] %s1388
      %1391 = dma.vmem_to_hbm [thread:$0]  %s1389, 256, %s3, [#allocation6]
    $region53: #{tpu_custom_call.1} parent=1 // pred_fallthru
      _
    // Predicated region
    $region54: #{tpu_custom_call.1} parent=1 // pred_check
      _
    $region55: #{tpu_custom_call.1} parent=1 // pred_check_branch
      %1393 = sbr.rel (0) target = $region57
    $region56: #{tpu_custom_call.1} parent=1 // pred_region
      %1394 = dma.done [#allocation6], 256
    $region57: #{tpu_custom_call.1} parent=1 // pred_fallthru
      _
    %1395 = vsyncpa [#allocation5], 1
    %1396 = vsyncpa [#allocation8], 1
    %1397 = vsyncpa [#allocation6], 1
  %1398 = vsyncmov [#allocation3]
  %s1399 = vpop.sfrf %1398
  %p1400 = scmp.eq.s32.totalorder %s1399, 0
  %p1401 = pneg %p1400
  %1403 = shalt.err (%p1401)
  %s1404 = scalar_lea.sflag [#allocation3], 1
  %1405 = vsyncmov %s1404
  %s1406 = vpop.sfrf %1405
  %p1407 = scmp.eq.s32.totalorder %s1406, 0
  %p1408 = pneg %p1407
  %1410 = shalt.err (%p1408)

</llo_original>
